<compile_context>
chip_gen: v7x
topology: tpu7x:2x2x1
jax: 0.10.0
libtpu: 0.0.40
codegen_flags: <defaults>
</compile_context>

<pallas_src>
import jax
import jax.numpy as jnp
from jax.experimental import pallas as pl
from jax.experimental.pallas import tpu as pltpu

# ---- "args" from set_args(), chosen small but consistent with the module ----
VOCAB_SIZE = 100
EMBED_DIM = 32
POS_SIZE = 40
POS_DIM = 8
HIDDEN_SIZE = 32          # bidirectional LSTM: hidden_size // 2 per direction
TAG_SIZE = 12
BATCH = 2
SEQ = 8
D_IN = EMBED_DIM + 2 * POS_DIM   # 48
HH = HIDDEN_SIZE // 2            # 16


def _rup8(x):
    return ((x + 7) // 8) * 8


# ------------------------------ host-side weight fusing ------------------------------
def _fuse_dir_cols(mat_f_T, mat_b_T, hh):
    """Gate-major, direction-routed column fuse.

    Rows 0:R (forward matrix) feed the forward gate columns, rows R:2R
    (backward matrix) feed the backward gate columns.  Column layout:
    [i_f i_b | f_f f_b | g_f g_b | o_f o_b], each group hh wide, 8*hh total.
    Used both for W_ih (R = D_IN) and the block-diagonal W_hh (R = hh).
    """
    rows = mat_f_T.shape[0]
    z = jnp.zeros((rows, hh), jnp.float32)
    cols = []
    for g in range(4):
        cols.append(jnp.concatenate([mat_f_T[:, g * hh:(g + 1) * hh], z], axis=0))
        cols.append(jnp.concatenate([z, mat_b_T[:, g * hh:(g + 1) * hh]], axis=0))
    return jnp.concatenate(cols, axis=1)              # (2*rows, 8*hh)


def _fuse_gate_bias(bf, bb, hh):
    parts = []
    for g in range(4):
        parts.append(bf[g * hh:(g + 1) * hh])
        parts.append(bb[g * hh:(g + 1) * hh])
    return jnp.concatenate(parts).reshape(1, 8 * hh)  # (1, 8*hh)


def _scale_g_columns(m, hh):
    """Pre-scale the g-gate column group by 2 so tanh(g) == 2*sigmoid(2g)-1 in-kernel."""
    scale = jnp.ones((1, 8 * hh), jnp.float32).at[:, 4 * hh:6 * hh].set(2.0)
    return m * scale


def _pack_const_slab(wih_sel, whh_blk, b_cat, att_w, rel_T, rel_bias):
    """Pack all kernel constants into one lane-dense (8,128)-aligned f32 slab."""
    din2, g_width = wih_sel.shape
    h2 = whh_blk.shape[0]
    b = att_w.shape[0]
    tag = rel_T.shape[1]
    r_wih = 0
    r_whh = r_wih + _rup8(din2)
    r_bias = r_whh + _rup8(h2)
    r_aw = r_bias + 8
    r_rb = r_aw + _rup8(b)
    r_rel = r_rb + _rup8(b)
    n_rows = r_rel + _rup8(h2)
    slab = jnp.zeros((n_rows, g_width), jnp.float32)
    slab = slab.at[r_wih:r_wih + din2, :].set(wih_sel)
    slab = slab.at[r_whh:r_whh + h2, :].set(whh_blk)
    slab = slab.at[r_bias:r_bias + 1, :].set(b_cat)
    slab = slab.at[r_aw:r_aw + b, 0:h2].set(att_w)
    slab = slab.at[r_rb:r_rb + b, 0:tag].set(rel_bias)
    slab = slab.at[r_rel:r_rel + h2, 0:tag].set(rel_T)
    offs = dict(wih=r_wih, whh=r_whh, bias=r_bias, aw=r_aw, rb=r_rb, rel=r_rel)
    return slab, offs


# ------------------------------ Pallas kernel ------------------------------
def _make_kernel(offs):
    r_wih, r_whh, r_bias = offs["wih"], offs["whh"], offs["bias"]
    r_aw, r_rb, r_rel = offs["aw"], offs["rb"], offs["rel"]

    def kernel(x_ref, slab_ref, out_ref):
        B, S, DIN2 = x_ref.shape          # DIN2 = 2*D_IN  ([t] | [S-1-t] halves)
        G = slab_ref.shape[1]             # 8*hh = 128
        H2 = G // 4                       # hidden_size (= 2*hh)
        hh = G // 8
        TAG = out_ref.shape[1]

        wih = slab_ref[pl.ds(r_wih, DIN2), :]                # (2*D_IN, G)
        whh = slab_ref[pl.ds(r_whh, H2), :]                  # (H2, G), block-diag per gate
        bias = slab_ref[pl.ds(r_bias, 1), :]                 # (1, G)
        aw = slab_ref[pl.ds(r_aw, B), pl.ds(0, H2)]          # (B, H2)
        rel_bias = slab_ref[pl.ds(r_rb, B), pl.ds(0, TAG)]   # (B, TAG)
        rel_T = slab_ref[pl.ds(r_rel, H2), pl.ds(0, TAG)]    # (H2, TAG)

        # Fused input projection for both directions / all timesteps.  The
        # direction-routed weight already pairs time k (fwd lanes) with time
        # S-1-k (bwd lanes), so no per-step select remains on the chain.
        x = x_ref[...].reshape(B * S, DIN2)
        xg = jnp.dot(x, wih, preferred_element_type=jnp.float32) + bias
        xg = xg.reshape(B, S, G)                              # (B, S, 128)

        # Fused bidirectional recurrence: one (B,32)@(32,128) MXU dot, one
        # full-vreg sigmoid and one tanh(c) per step (2 EUP pushes).  The
        # g-gate tanh is folded into the sigmoid: its pre-activation was
        # scaled by 2 host-side, so tanh(g) == 2*sigmoid(2g) - 1.
        # TODO(synk): holding W_hh resident in the MXU via
        # pltpu.matmul_push_rhs / matmul_acc_lhs / matmul_pop was considered
        # but not applied: per-step pop/accumulate semantics differ between
        # the MRF (v5e/v6e) and MRB (v7x) result paths and can't be verified here.
        h = jnp.zeros((B, H2), jnp.float32)      # [h_f | h_b]
        c = jnp.zeros((B, H2), jnp.float32)      # [c_f | c_b]
        h_steps = []
        for k in range(S):
            gates = xg[:, k, :] + jnp.dot(h, whh, preferred_element_type=jnp.float32)
            sg = jax.nn.sigmoid(gates)                        # one full-vreg sigmoid
            i_g = sg[:, 0:H2]                                 # [i_f | i_b]
            f_g = sg[:, H2:2 * H2]                            # [f_f | f_b]
            g_g = 2.0 * sg[:, 2 * H2:3 * H2] - 1.0            # == tanh(raw g pre-act)
            o_g = sg[:, 3 * H2:4 * H2]                        # [o_f | o_b]
            c = f_g * c + i_g * g_g
            h = o_g * jnp.tanh(c)
            h_steps.append(h)

        # h_steps[k][:, :hh] = fwd hidden at time k; [:, hh:] = bwd hidden at
        # time S-1-k.  Time-align with one trace-time list reverse + one
        # lane-masked select (no per-timestep slice/concat shuffles).
        h_fwd = jnp.stack(h_steps, axis=1)                    # (B, S, H2)
        h_bwd = jnp.stack(h_steps[::-1], axis=1)              # (B, S, H2), time-reversed
        half = jax.lax.broadcasted_iota(jnp.int32, (1, 1, H2), 2) < hh
        h_mat = jnp.where(half, h_fwd, h_bwd)                 # (B, S, H2)

        # Attention: a = softmax(att_w . tanh(H)) over seq; att = H^T a.
        # Normalization deferred to one (B,H2) scale; approx reciprocal (EUP).
        m = jnp.tanh(h_mat)
        scores = jnp.sum(m * aw[:, None, :], axis=-1)         # (B, S)
        scores = scores - jnp.max(scores, axis=1, keepdims=True)
        e = jnp.exp(scores)
        att_un = jnp.sum(e[:, :, None] * h_mat, axis=1)       # (B, H2), unnormalized
        inv_l = pl.reciprocal(jnp.sum(e, axis=1, keepdims=True), approx=True)
        att = jnp.tanh(att_un * inv_l)

        # Relation scores + bias + softmax over tags (single lane-dense store).
        logits = jnp.dot(att, rel_T, preferred_element_type=jnp.float32) + rel_bias
        logits = logits - jnp.max(logits, axis=1, keepdims=True)
        ee = jnp.exp(logits)
        inv_z = pl.reciprocal(jnp.sum(ee, axis=1, keepdims=True), approx=True)
        out_ref[...] = ee * inv_z                             # (B, TAG)

    return kernel


def bilstm_att_pallas(x_pair, slab, offs, tag_size):
    """x_pair: (B, S, 2*D_IN) = [embeds | time-reversed embeds]; returns (B, TAG)."""
    B, S, DIN2 = x_pair.shape
    R, G = slab.shape
    # Kernel is latency-bound at this size; everything fits VMEM trivially, so a
    # single grid step with full-array blocks is the right shape.  With larger
    # real batches, add a leading "parallel" batch axis (2x on v7x's two TCs).
    grid_spec = pltpu.PrefetchScalarGridSpec(
        num_scalar_prefetch=0,
        grid=(1,),
        in_specs=[
            pl.BlockSpec((B, S, DIN2), lambda i: (0, 0, 0)),   # paired embeds
            pl.BlockSpec((R, G), lambda i: (0, 0)),            # packed constant slab
        ],
        out_specs=pl.BlockSpec((B, tag_size), lambda i: (0, 0)),
    )
    return pl.pallas_call(
        _make_kernel(offs),
        out_shape=jax.ShapeDtypeStruct((B, tag_size), jnp.float32),
        grid_spec=grid_spec,
        compiler_params=pltpu.CompilerParams(
            dimension_semantics=("arbitrary",)),
    )(x_pair, slab)


# ------------------------ pure-JAX fp32 reference (for checking) ------------------------
def bilstm_att_reference(embeds, wih_f, whh_f, b_f, wih_b, whh_b, b_b,
                         att_w, relation_emb, rel_bias):
    B, S, _ = embeds.shape
    H = relation_emb.shape[1]
    hh = H // 2
    HI = jax.lax.Precision.HIGHEST

    def run_dir(x, wih, whh, bias, reverse):
        hs = [None] * S
        h = jnp.zeros((1, hh), jnp.float32)
        c = jnp.zeros((1, hh), jnp.float32)
        order = range(S - 1, -1, -1) if reverse else range(S)
        for t in order:
            g = (jnp.dot(x[t:t + 1], wih.T, precision=HI)
                 + jnp.dot(h, whh.T, precision=HI) + bias)
            i_g = jax.nn.sigmoid(g[:, :hh])
            f_g = jax.nn.sigmoid(g[:, hh:2 * hh])
            g_g = jnp.tanh(g[:, 2 * hh:3 * hh])
            o_g = jax.nn.sigmoid(g[:, 3 * hh:])
            c = f_g * c + i_g * g_g
            h = o_g * jnp.tanh(c)
            hs[t] = h
        return jnp.concatenate(hs, axis=0)

    outs = []
    for b in range(B):
        x = embeds[b]
        hf = run_dir(x, wih_f, whh_f, b_f, False)
        hb = run_dir(x, wih_b, whh_b, b_b, True)
        hm = jnp.concatenate([hf, hb], axis=1)                 # (S, H)
        m = jnp.tanh(hm)
        scores = jnp.dot(m, att_w[b:b + 1].T, precision=HI)    # (S, 1)
        a = jax.nn.softmax(scores, axis=0)
        att = jnp.tanh(jnp.dot(a.T, hm, precision=HI))         # (1, H)
        logits = jnp.dot(att, relation_emb.T, precision=HI) + rel_bias[b:b + 1]
        outs.append(jax.nn.softmax(logits, axis=1))
    return jnp.concatenate(outs, axis=0)


if __name__ == "__main__":
    key = jax.random.PRNGKey(0)
    keys = jax.random.split(key, 16)

    # Deterministic "checkpoint-free" parameter init.
    word_emb = 0.1 * jax.random.normal(keys[0], (VOCAB_SIZE, EMBED_DIM), jnp.float32)
    pos1_emb = 0.1 * jax.random.normal(keys[1], (POS_SIZE, POS_DIM), jnp.float32)
    pos2_emb = 0.1 * jax.random.normal(keys[2], (POS_SIZE, POS_DIM), jnp.float32)

    # LSTM params in PyTorch layout (4*hh, in) / (4*hh, hh); gate order i,f,g,o.
    wih_f = 0.1 * jax.random.normal(keys[3], (4 * HH, D_IN), jnp.float32)
    whh_f = 0.1 * jax.random.normal(keys[4], (4 * HH, HH), jnp.float32)
    bih_f = 0.1 * jax.random.normal(keys[5], (4 * HH,), jnp.float32)
    bhh_f = 0.1 * jax.random.normal(keys[6], (4 * HH,), jnp.float32)
    wih_b = 0.1 * jax.random.normal(keys[7], (4 * HH, D_IN), jnp.float32)
    whh_b = 0.1 * jax.random.normal(keys[8], (4 * HH, HH), jnp.float32)
    bih_b = 0.1 * jax.random.normal(keys[9], (4 * HH,), jnp.float32)
    bhh_b = 0.1 * jax.random.normal(keys[10], (4 * HH,), jnp.float32)

    relation_emb = 0.1 * jax.random.normal(keys[11], (TAG_SIZE, HIDDEN_SIZE), jnp.float32)
    # forward() draws these with randn each call; we draw them once, deterministically.
    att_weight = jax.random.normal(keys[12], (BATCH, HIDDEN_SIZE), jnp.float32)
    relation_bias = jax.random.normal(keys[13], (BATCH, TAG_SIZE), jnp.float32)

    # Example inputs.
    input_ids = jax.random.randint(keys[14], (BATCH, SEQ), 0, VOCAB_SIZE)
    pkey1, pkey2 = jax.random.split(keys[15])
    pos1 = jax.random.randint(pkey1, (BATCH, SEQ), 0, POS_SIZE)
    pos2 = jax.random.randint(pkey2, (BATCH, SEQ), 0, POS_SIZE)

    # Glue: embedding lookups + concat (plain JAX).
    embeds = jnp.concatenate(
        [word_emb[input_ids], pos1_emb[pos1], pos2_emb[pos2]], axis=-1)  # (B, S, D_IN)

    # Host-side weight fusion for the kernel (g columns pre-scaled by 2 so the
    # kernel can fold the g-gate tanh into the full-vreg sigmoid).
    b_f = bih_f + bhh_f
    b_b = bih_b + bhh_b
    wih_sel = _scale_g_columns(_fuse_dir_cols(wih_f.T, wih_b.T, HH), HH)   # (96, 128)
    whh_blk = _scale_g_columns(_fuse_dir_cols(whh_f.T, whh_b.T, HH), HH)   # (32, 128)
    b_cat = _scale_g_columns(_fuse_gate_bias(b_f, b_b, HH), HH)            # (1, 128)
    rel_T = relation_emb.T                                                  # (32, 12)
    slab, offs = _pack_const_slab(wih_sel, whh_blk, b_cat,
                                  att_weight, rel_T, relation_bias)

    # Pair each timestep with its time-reversed counterpart so the kernel's
    # single input projection yields fwd(t=k) / bwd(t=S-1-k) lanes directly.
    x_pair = jnp.concatenate([embeds, embeds[:, ::-1, :]], axis=-1)        # (B, S, 96)

    out = bilstm_att_pallas(x_pair, slab, offs, TAG_SIZE)
    out = jax.block_until_ready(out)

    ref = bilstm_att_reference(embeds, wih_f, whh_f, b_f, wih_b, whh_b, b_b,
                               att_weight, relation_emb, relation_bias)
    ref = jax.block_until_ready(ref)

    assert out.shape == (BATCH, TAG_SIZE)
    # Kernel uses default (bf16-pass) MXU precision + approx reciprocals; reference is fp32.
    assert jnp.allclose(out, ref, atol=2e-3, rtol=2e-3), (out, ref)
    print("KERNEL_OK")
</pallas_src>

<mosaic_0001>
module attributes {stable_mosaic.version = 11 : i64} {
  func.func @kernel(%arg0: i32, %arg1: memref<2x8x96xf32, #tpu.memory_space<vmem>>, %arg2: memref<184x128xf32, #tpu.memory_space<vmem>>, %arg3: memref<2x12xf32, #tpu.memory_space<vmem>>) attributes {dimension_semantics = [#tpu.dimension_semantics<arbitrary>], iteration_bounds = array<i64: 1>, scalar_prefetch = 0 : i64, scratch_operands = 0 : i64, tpu.core_type = #tpu.core_type<tc>, window_params = [{pipeline_mode = #tpu.pipeline_mode<synchronous>, transform_indices = @transform_0, window_bounds = array<i64: 2, 8, 96>}, {pipeline_mode = #tpu.pipeline_mode<synchronous>, transform_indices = @transform_1, window_bounds = array<i64: 184, 128>}, {pipeline_mode = #tpu.pipeline_mode<synchronous>, transform_indices = @transform_2, window_bounds = array<i64: 2, 12>}]} {
    %c0 = arith.constant 0 : index
    %c0_0 = arith.constant 0 : index
    %0 = vector.load %arg2[%c0, %c0_0] : memref<184x128xf32, #tpu.memory_space<vmem>>, vector<96x128xf32>
    %c96 = arith.constant 96 : index
    %c0_1 = arith.constant 0 : index
    %1 = vector.load %arg2[%c96, %c0_1] : memref<184x128xf32, #tpu.memory_space<vmem>>, vector<32x128xf32>
    %c128 = arith.constant 128 : index
    %c0_2 = arith.constant 0 : index
    %2 = vector.load %arg2[%c128, %c0_2] : memref<184x128xf32, #tpu.memory_space<vmem>>, vector<1x128xf32>
    %c136 = arith.constant 136 : index
    %c0_3 = arith.constant 0 : index
    %3 = vector.load %arg2[%c136, %c0_3] : memref<184x128xf32, #tpu.memory_space<vmem>>, vector<2x32xf32>
    %c144 = arith.constant 144 : index
    %c0_4 = arith.constant 0 : index
    %4 = vector.load %arg2[%c144, %c0_4] : memref<184x128xf32, #tpu.memory_space<vmem>>, vector<2x12xf32>
    %c152 = arith.constant 152 : index
    %c0_5 = arith.constant 0 : index
    %5 = vector.load %arg2[%c152, %c0_5] : memref<184x128xf32, #tpu.memory_space<vmem>>, vector<32x12xf32>
    %c0_6 = arith.constant 0 : index
    %c0_7 = arith.constant 0 : index
    %c0_8 = arith.constant 0 : index
    %6 = vector.load %arg1[%c0_6, %c0_7, %c0_8] : memref<2x8x96xf32, #tpu.memory_space<vmem>>, vector<2x8x96xf32>
    %7 = vector.shape_cast %6 : vector<2x8x96xf32> to vector<16x96xf32>
    %cst = arith.constant dense<0.000000e+00> : vector<16x128xf32>
    %8 = tpu.matmul %7, %0, %cst {dimension_numbers = #tpu.dot_dimension_numbers<[1], [0], [0], [1], [0, 0, 1, 1], [], []>} : vector<16x96xf32>, vector<96x128xf32>, vector<16x128xf32> -> vector<16x128xf32>
    %9 = vector.broadcast %2 : vector<1x128xf32> to vector<16x128xf32>
    %10 = arith.addf %8, %9 : vector<16x128xf32>
    %11 = vector.shape_cast %10 : vector<16x128xf32> to vector<2x8x128xf32>
    %cst_9 = arith.constant 0.000000e+00 : f32
    %12 = vector.broadcast %cst_9 : f32 to vector<2x32xf32>
    %cst_10 = arith.constant 0.000000e+00 : f32
    %13 = vector.broadcast %cst_10 : f32 to vector<2x32xf32>
    %14 = vector.extract_strided_slice %11 {offsets = [0, 0, 0], sizes = [2, 1, 128], strides = [1, 1, 1]} : vector<2x8x128xf32> to vector<2x1x128xf32>
    %15 = vector.shape_cast %14 : vector<2x1x128xf32> to vector<2x128xf32>
    %cst_11 = arith.constant dense<0.000000e+00> : vector<2x128xf32>
    %16 = tpu.matmul %12, %1, %cst_11 {dimension_numbers = #tpu.dot_dimension_numbers<[1], [0], [0], [1], [0, 0, 1, 1], [], []>} : vector<2x32xf32>, vector<32x128xf32>, vector<2x128xf32> -> vector<2x128xf32>
    %17 = arith.addf %15, %16 : vector<2x128xf32>
    %18 = arith.negf %17 : vector<2x128xf32>
    %19 = math.exp %18 : vector<2x128xf32>
    %cst_12 = arith.constant 1.000000e+00 : f32
    %20 = vector.broadcast %cst_12 : f32 to vector<2x128xf32>
    %21 = arith.addf %20, %19 : vector<2x128xf32>
    %22 = arith.divf %20, %21 : vector<2x128xf32>
    %23 = vector.extract_strided_slice %22 {offsets = [0, 0], sizes = [2, 32], strides = [1, 1]} : vector<2x128xf32> to vector<2x32xf32>
    %24 = vector.extract_strided_slice %22 {offsets = [0, 32], sizes = [2, 32], strides = [1, 1]} : vector<2x128xf32> to vector<2x32xf32>
    %25 = vector.extract_strided_slice %22 {offsets = [0, 64], sizes = [2, 32], strides = [1, 1]} : vector<2x128xf32> to vector<2x32xf32>
    %cst_13 = arith.constant 2.000000e+00 : f32
    %26 = vector.broadcast %cst_13 : f32 to vector<2x32xf32>
    %27 = arith.mulf %26, %25 : vector<2x32xf32>
    %cst_14 = arith.constant 1.000000e+00 : f32
    %28 = vector.broadcast %cst_14 : f32 to vector<2x32xf32>
    %29 = arith.subf %27, %28 : vector<2x32xf32>
    %30 = vector.extract_strided_slice %22 {offsets = [0, 96], sizes = [2, 32], strides = [1, 1]} : vector<2x128xf32> to vector<2x32xf32>
    %31 = arith.mulf %24, %13 : vector<2x32xf32>
    %32 = arith.mulf %23, %29 : vector<2x32xf32>
    %33 = arith.addf %31, %32 : vector<2x32xf32>
    %34 = math.tanh %33 : vector<2x32xf32>
    %35 = arith.mulf %30, %34 : vector<2x32xf32>
    %36 = vector.extract_strided_slice %11 {offsets = [0, 1, 0], sizes = [2, 1, 128], strides = [1, 1, 1]} : vector<2x8x128xf32> to vector<2x1x128xf32>
    %37 = vector.shape_cast %36 : vector<2x1x128xf32> to vector<2x128xf32>
    %cst_15 = arith.constant dense<0.000000e+00> : vector<2x128xf32>
    %38 = tpu.matmul %35, %1, %cst_15 {dimension_numbers = #tpu.dot_dimension_numbers<[1], [0], [0], [1], [0, 0, 1, 1], [], []>} : vector<2x32xf32>, vector<32x128xf32>, vector<2x128xf32> -> vector<2x128xf32>
    %39 = arith.addf %37, %38 : vector<2x128xf32>
    %40 = arith.negf %39 : vector<2x128xf32>
    %41 = math.exp %40 : vector<2x128xf32>
    %cst_16 = arith.constant 1.000000e+00 : f32
    %42 = vector.broadcast %cst_16 : f32 to vector<2x128xf32>
    %43 = arith.addf %42, %41 : vector<2x128xf32>
    %44 = arith.divf %42, %43 : vector<2x128xf32>
    %45 = vector.extract_strided_slice %44 {offsets = [0, 0], sizes = [2, 32], strides = [1, 1]} : vector<2x128xf32> to vector<2x32xf32>
    %46 = vector.extract_strided_slice %44 {offsets = [0, 32], sizes = [2, 32], strides = [1, 1]} : vector<2x128xf32> to vector<2x32xf32>
    %47 = vector.extract_strided_slice %44 {offsets = [0, 64], sizes = [2, 32], strides = [1, 1]} : vector<2x128xf32> to vector<2x32xf32>
    %cst_17 = arith.constant 2.000000e+00 : f32
    %48 = vector.broadcast %cst_17 : f32 to vector<2x32xf32>
    %49 = arith.mulf %48, %47 : vector<2x32xf32>
    %cst_18 = arith.constant 1.000000e+00 : f32
    %50 = vector.broadcast %cst_18 : f32 to vector<2x32xf32>
    %51 = arith.subf %49, %50 : vector<2x32xf32>
    %52 = vector.extract_strided_slice %44 {offsets = [0, 96], sizes = [2, 32], strides = [1, 1]} : vector<2x128xf32> to vector<2x32xf32>
    %53 = arith.mulf %46, %33 : vector<2x32xf32>
    %54 = arith.mulf %45, %51 : vector<2x32xf32>
    %55 = arith.addf %53, %54 : vector<2x32xf32>
    %56 = math.tanh %55 : vector<2x32xf32>
    %57 = arith.mulf %52, %56 : vector<2x32xf32>
    %58 = vector.extract_strided_slice %11 {offsets = [0, 2, 0], sizes = [2, 1, 128], strides = [1, 1, 1]} : vector<2x8x128xf32> to vector<2x1x128xf32>
    %59 = vector.shape_cast %58 : vector<2x1x128xf32> to vector<2x128xf32>
    %cst_19 = arith.constant dense<0.000000e+00> : vector<2x128xf32>
    %60 = tpu.matmul %57, %1, %cst_19 {dimension_numbers = #tpu.dot_dimension_numbers<[1], [0], [0], [1], [0, 0, 1, 1], [], []>} : vector<2x32xf32>, vector<32x128xf32>, vector<2x128xf32> -> vector<2x128xf32>
    %61 = arith.addf %59, %60 : vector<2x128xf32>
    %62 = arith.negf %61 : vector<2x128xf32>
    %63 = math.exp %62 : vector<2x128xf32>
    %cst_20 = arith.constant 1.000000e+00 : f32
    %64 = vector.broadcast %cst_20 : f32 to vector<2x128xf32>
    %65 = arith.addf %64, %63 : vector<2x128xf32>
    %66 = arith.divf %64, %65 : vector<2x128xf32>
    %67 = vector.extract_strided_slice %66 {offsets = [0, 0], sizes = [2, 32], strides = [1, 1]} : vector<2x128xf32> to vector<2x32xf32>
    %68 = vector.extract_strided_slice %66 {offsets = [0, 32], sizes = [2, 32], strides = [1, 1]} : vector<2x128xf32> to vector<2x32xf32>
    %69 = vector.extract_strided_slice %66 {offsets = [0, 64], sizes = [2, 32], strides = [1, 1]} : vector<2x128xf32> to vector<2x32xf32>
    %cst_21 = arith.constant 2.000000e+00 : f32
    %70 = vector.broadcast %cst_21 : f32 to vector<2x32xf32>
    %71 = arith.mulf %70, %69 : vector<2x32xf32>
    %cst_22 = arith.constant 1.000000e+00 : f32
    %72 = vector.broadcast %cst_22 : f32 to vector<2x32xf32>
    %73 = arith.subf %71, %72 : vector<2x32xf32>
    %74 = vector.extract_strided_slice %66 {offsets = [0, 96], sizes = [2, 32], strides = [1, 1]} : vector<2x128xf32> to vector<2x32xf32>
    %75 = arith.mulf %68, %55 : vector<2x32xf32>
    %76 = arith.mulf %67, %73 : vector<2x32xf32>
    %77 = arith.addf %75, %76 : vector<2x32xf32>
    %78 = math.tanh %77 : vector<2x32xf32>
    %79 = arith.mulf %74, %78 : vector<2x32xf32>
    %80 = vector.extract_strided_slice %11 {offsets = [0, 3, 0], sizes = [2, 1, 128], strides = [1, 1, 1]} : vector<2x8x128xf32> to vector<2x1x128xf32>
    %81 = vector.shape_cast %80 : vector<2x1x128xf32> to vector<2x128xf32>
    %cst_23 = arith.constant dense<0.000000e+00> : vector<2x128xf32>
    %82 = tpu.matmul %79, %1, %cst_23 {dimension_numbers = #tpu.dot_dimension_numbers<[1], [0], [0], [1], [0, 0, 1, 1], [], []>} : vector<2x32xf32>, vector<32x128xf32>, vector<2x128xf32> -> vector<2x128xf32>
    %83 = arith.addf %81, %82 : vector<2x128xf32>
    %84 = arith.negf %83 : vector<2x128xf32>
    %85 = math.exp %84 : vector<2x128xf32>
    %cst_24 = arith.constant 1.000000e+00 : f32
    %86 = vector.broadcast %cst_24 : f32 to vector<2x128xf32>
    %87 = arith.addf %86, %85 : vector<2x128xf32>
    %88 = arith.divf %86, %87 : vector<2x128xf32>
    %89 = vector.extract_strided_slice %88 {offsets = [0, 0], sizes = [2, 32], strides = [1, 1]} : vector<2x128xf32> to vector<2x32xf32>
    %90 = vector.extract_strided_slice %88 {offsets = [0, 32], sizes = [2, 32], strides = [1, 1]} : vector<2x128xf32> to vector<2x32xf32>
    %91 = vector.extract_strided_slice %88 {offsets = [0, 64], sizes = [2, 32], strides = [1, 1]} : vector<2x128xf32> to vector<2x32xf32>
    %cst_25 = arith.constant 2.000000e+00 : f32
    %92 = vector.broadcast %cst_25 : f32 to vector<2x32xf32>
    %93 = arith.mulf %92, %91 : vector<2x32xf32>
    %cst_26 = arith.constant 1.000000e+00 : f32
    %94 = vector.broadcast %cst_26 : f32 to vector<2x32xf32>
    %95 = arith.subf %93, %94 : vector<2x32xf32>
    %96 = vector.extract_strided_slice %88 {offsets = [0, 96], sizes = [2, 32], strides = [1, 1]} : vector<2x128xf32> to vector<2x32xf32>
    %97 = arith.mulf %90, %77 : vector<2x32xf32>
    %98 = arith.mulf %89, %95 : vector<2x32xf32>
    %99 = arith.addf %97, %98 : vector<2x32xf32>
    %100 = math.tanh %99 : vector<2x32xf32>
    %101 = arith.mulf %96, %100 : vector<2x32xf32>
    %102 = vector.extract_strided_slice %11 {offsets = [0, 4, 0], sizes = [2, 1, 128], strides = [1, 1, 1]} : vector<2x8x128xf32> to vector<2x1x128xf32>
    %103 = vector.shape_cast %102 : vector<2x1x128xf32> to vector<2x128xf32>
    %cst_27 = arith.constant dense<0.000000e+00> : vector<2x128xf32>
    %104 = tpu.matmul %101, %1, %cst_27 {dimension_numbers = #tpu.dot_dimension_numbers<[1], [0], [0], [1], [0, 0, 1, 1], [], []>} : vector<2x32xf32>, vector<32x128xf32>, vector<2x128xf32> -> vector<2x128xf32>
    %105 = arith.addf %103, %104 : vector<2x128xf32>
    %106 = arith.negf %105 : vector<2x128xf32>
    %107 = math.exp %106 : vector<2x128xf32>
    %cst_28 = arith.constant 1.000000e+00 : f32
    %108 = vector.broadcast %cst_28 : f32 to vector<2x128xf32>
    %109 = arith.addf %108, %107 : vector<2x128xf32>
    %110 = arith.divf %108, %109 : vector<2x128xf32>
    %111 = vector.extract_strided_slice %110 {offsets = [0, 0], sizes = [2, 32], strides = [1, 1]} : vector<2x128xf32> to vector<2x32xf32>
    %112 = vector.extract_strided_slice %110 {offsets = [0, 32], sizes = [2, 32], strides = [1, 1]} : vector<2x128xf32> to vector<2x32xf32>
    %113 = vector.extract_strided_slice %110 {offsets = [0, 64], sizes = [2, 32], strides = [1, 1]} : vector<2x128xf32> to vector<2x32xf32>
    %cst_29 = arith.constant 2.000000e+00 : f32
    %114 = vector.broadcast %cst_29 : f32 to vector<2x32xf32>
    %115 = arith.mulf %114, %113 : vector<2x32xf32>
    %cst_30 = arith.constant 1.000000e+00 : f32
    %116 = vector.broadcast %cst_30 : f32 to vector<2x32xf32>
    %117 = arith.subf %115, %116 : vector<2x32xf32>
    %118 = vector.extract_strided_slice %110 {offsets = [0, 96], sizes = [2, 32], strides = [1, 1]} : vector<2x128xf32> to vector<2x32xf32>
    %119 = arith.mulf %112, %99 : vector<2x32xf32>
    %120 = arith.mulf %111, %117 : vector<2x32xf32>
    %121 = arith.addf %119, %120 : vector<2x32xf32>
    %122 = math.tanh %121 : vector<2x32xf32>
    %123 = arith.mulf %118, %122 : vector<2x32xf32>
    %124 = vector.extract_strided_slice %11 {offsets = [0, 5, 0], sizes = [2, 1, 128], strides = [1, 1, 1]} : vector<2x8x128xf32> to vector<2x1x128xf32>
    %125 = vector.shape_cast %124 : vector<2x1x128xf32> to vector<2x128xf32>
    %cst_31 = arith.constant dense<0.000000e+00> : vector<2x128xf32>
    %126 = tpu.matmul %123, %1, %cst_31 {dimension_numbers = #tpu.dot_dimension_numbers<[1], [0], [0], [1], [0, 0, 1, 1], [], []>} : vector<2x32xf32>, vector<32x128xf32>, vector<2x128xf32> -> vector<2x128xf32>
    %127 = arith.addf %125, %126 : vector<2x128xf32>
    %128 = arith.negf %127 : vector<2x128xf32>
    %129 = math.exp %128 : vector<2x128xf32>
    %cst_32 = arith.constant 1.000000e+00 : f32
    %130 = vector.broadcast %cst_32 : f32 to vector<2x128xf32>
    %131 = arith.addf %130, %129 : vector<2x128xf32>
    %132 = arith.divf %130, %131 : vector<2x128xf32>
    %133 = vector.extract_strided_slice %132 {offsets = [0, 0], sizes = [2, 32], strides = [1, 1]} : vector<2x128xf32> to vector<2x32xf32>
    %134 = vector.extract_strided_slice %132 {offsets = [0, 32], sizes = [2, 32], strides = [1, 1]} : vector<2x128xf32> to vector<2x32xf32>
    %135 = vector.extract_strided_slice %132 {offsets = [0, 64], sizes = [2, 32], strides = [1, 1]} : vector<2x128xf32> to vector<2x32xf32>
    %cst_33 = arith.constant 2.000000e+00 : f32
    %136 = vector.broadcast %cst_33 : f32 to vector<2x32xf32>
    %137 = arith.mulf %136, %135 : vector<2x32xf32>
    %cst_34 = arith.constant 1.000000e+00 : f32
    %138 = vector.broadcast %cst_34 : f32 to vector<2x32xf32>
    %139 = arith.subf %137, %138 : vector<2x32xf32>
    %140 = vector.extract_strided_slice %132 {offsets = [0, 96], sizes = [2, 32], strides = [1, 1]} : vector<2x128xf32> to vector<2x32xf32>
    %141 = arith.mulf %134, %121 : vector<2x32xf32>
    %142 = arith.mulf %133, %139 : vector<2x32xf32>
    %143 = arith.addf %141, %142 : vector<2x32xf32>
    %144 = math.tanh %143 : vector<2x32xf32>
    %145 = arith.mulf %140, %144 : vector<2x32xf32>
    %146 = vector.extract_strided_slice %11 {offsets = [0, 6, 0], sizes = [2, 1, 128], strides = [1, 1, 1]} : vector<2x8x128xf32> to vector<2x1x128xf32>
    %147 = vector.shape_cast %146 : vector<2x1x128xf32> to vector<2x128xf32>
    %cst_35 = arith.constant dense<0.000000e+00> : vector<2x128xf32>
    %148 = tpu.matmul %145, %1, %cst_35 {dimension_numbers = #tpu.dot_dimension_numbers<[1], [0], [0], [1], [0, 0, 1, 1], [], []>} : vector<2x32xf32>, vector<32x128xf32>, vector<2x128xf32> -> vector<2x128xf32>
    %149 = arith.addf %147, %148 : vector<2x128xf32>
    %150 = arith.negf %149 : vector<2x128xf32>
    %151 = math.exp %150 : vector<2x128xf32>
    %cst_36 = arith.constant 1.000000e+00 : f32
    %152 = vector.broadcast %cst_36 : f32 to vector<2x128xf32>
    %153 = arith.addf %152, %151 : vector<2x128xf32>
    %154 = arith.divf %152, %153 : vector<2x128xf32>
    %155 = vector.extract_strided_slice %154 {offsets = [0, 0], sizes = [2, 32], strides = [1, 1]} : vector<2x128xf32> to vector<2x32xf32>
    %156 = vector.extract_strided_slice %154 {offsets = [0, 32], sizes = [2, 32], strides = [1, 1]} : vector<2x128xf32> to vector<2x32xf32>
    %157 = vector.extract_strided_slice %154 {offsets = [0, 64], sizes = [2, 32], strides = [1, 1]} : vector<2x128xf32> to vector<2x32xf32>
    %cst_37 = arith.constant 2.000000e+00 : f32
    %158 = vector.broadcast %cst_37 : f32 to vector<2x32xf32>
    %159 = arith.mulf %158, %157 : vector<2x32xf32>
    %cst_38 = arith.constant 1.000000e+00 : f32
    %160 = vector.broadcast %cst_38 : f32 to vector<2x32xf32>
    %161 = arith.subf %159, %160 : vector<2x32xf32>
    %162 = vector.extract_strided_slice %154 {offsets = [0, 96], sizes = [2, 32], strides = [1, 1]} : vector<2x128xf32> to vector<2x32xf32>
    %163 = arith.mulf %156, %143 : vector<2x32xf32>
    %164 = arith.mulf %155, %161 : vector<2x32xf32>
    %165 = arith.addf %163, %164 : vector<2x32xf32>
    %166 = math.tanh %165 : vector<2x32xf32>
    %167 = arith.mulf %162, %166 : vector<2x32xf32>
    %168 = vector.extract_strided_slice %11 {offsets = [0, 7, 0], sizes = [2, 1, 128], strides = [1, 1, 1]} : vector<2x8x128xf32> to vector<2x1x128xf32>
    %169 = vector.shape_cast %168 : vector<2x1x128xf32> to vector<2x128xf32>
    %cst_39 = arith.constant dense<0.000000e+00> : vector<2x128xf32>
    %170 = tpu.matmul %167, %1, %cst_39 {dimension_numbers = #tpu.dot_dimension_numbers<[1], [0], [0], [1], [0, 0, 1, 1], [], []>} : vector<2x32xf32>, vector<32x128xf32>, vector<2x128xf32> -> vector<2x128xf32>
    %171 = arith.addf %169, %170 : vector<2x128xf32>
    %172 = arith.negf %171 : vector<2x128xf32>
    %173 = math.exp %172 : vector<2x128xf32>
    %cst_40 = arith.constant 1.000000e+00 : f32
    %174 = vector.broadcast %cst_40 : f32 to vector<2x128xf32>
    %175 = arith.addf %174, %173 : vector<2x128xf32>
    %176 = arith.divf %174, %175 : vector<2x128xf32>
    %177 = vector.extract_strided_slice %176 {offsets = [0, 0], sizes = [2, 32], strides = [1, 1]} : vector<2x128xf32> to vector<2x32xf32>
    %178 = vector.extract_strided_slice %176 {offsets = [0, 32], sizes = [2, 32], strides = [1, 1]} : vector<2x128xf32> to vector<2x32xf32>
    %179 = vector.extract_strided_slice %176 {offsets = [0, 64], sizes = [2, 32], strides = [1, 1]} : vector<2x128xf32> to vector<2x32xf32>
    %cst_41 = arith.constant 2.000000e+00 : f32
    %180 = vector.broadcast %cst_41 : f32 to vector<2x32xf32>
    %181 = arith.mulf %180, %179 : vector<2x32xf32>
    %cst_42 = arith.constant 1.000000e+00 : f32
    %182 = vector.broadcast %cst_42 : f32 to vector<2x32xf32>
    %183 = arith.subf %181, %182 : vector<2x32xf32>
    %184 = vector.extract_strided_slice %176 {offsets = [0, 96], sizes = [2, 32], strides = [1, 1]} : vector<2x128xf32> to vector<2x32xf32>
    %185 = arith.mulf %178, %165 : vector<2x32xf32>
    %186 = arith.mulf %177, %183 : vector<2x32xf32>
    %187 = arith.addf %185, %186 : vector<2x32xf32>
    %188 = math.tanh %187 : vector<2x32xf32>
    %189 = arith.mulf %184, %188 : vector<2x32xf32>
    %190 = vector.shape_cast %35 : vector<2x32xf32> to vector<2x1x32xf32>
    %191 = vector.shape_cast %57 : vector<2x32xf32> to vector<2x1x32xf32>
    %192 = vector.shape_cast %79 : vector<2x32xf32> to vector<2x1x32xf32>
    %193 = vector.shape_cast %101 : vector<2x32xf32> to vector<2x1x32xf32>
    %194 = vector.shape_cast %123 : vector<2x32xf32> to vector<2x1x32xf32>
    %195 = vector.shape_cast %145 : vector<2x32xf32> to vector<2x1x32xf32>
    %196 = vector.shape_cast %167 : vector<2x32xf32> to vector<2x1x32xf32>
    %197 = vector.shape_cast %189 : vector<2x32xf32> to vector<2x1x32xf32>
    %198 = tpu.concatenate %190, %191, %192, %193, %194, %195, %196, %197 in 1 : vector<2x1x32xf32>, vector<2x1x32xf32>, vector<2x1x32xf32>, vector<2x1x32xf32>, vector<2x1x32xf32>, vector<2x1x32xf32>, vector<2x1x32xf32>, vector<2x1x32xf32> -> vector<2x8x32xf32>
    %199 = vector.shape_cast %189 : vector<2x32xf32> to vector<2x1x32xf32>
    %200 = vector.shape_cast %167 : vector<2x32xf32> to vector<2x1x32xf32>
    %201 = vector.shape_cast %145 : vector<2x32xf32> to vector<2x1x32xf32>
    %202 = vector.shape_cast %123 : vector<2x32xf32> to vector<2x1x32xf32>
    %203 = vector.shape_cast %101 : vector<2x32xf32> to vector<2x1x32xf32>
    %204 = vector.shape_cast %79 : vector<2x32xf32> to vector<2x1x32xf32>
    %205 = vector.shape_cast %57 : vector<2x32xf32> to vector<2x1x32xf32>
    %206 = vector.shape_cast %35 : vector<2x32xf32> to vector<2x1x32xf32>
    %207 = tpu.concatenate %199, %200, %201, %202, %203, %204, %205, %206 in 1 : vector<2x1x32xf32>, vector<2x1x32xf32>, vector<2x1x32xf32>, vector<2x1x32xf32>, vector<2x1x32xf32>, vector<2x1x32xf32>, vector<2x1x32xf32>, vector<2x1x32xf32> -> vector<2x8x32xf32>
    %208 = tpu.iota {dimensions = array<i32: 2>} : vector<1x1x32xi32>
    %c16_i32 = arith.constant 16 : i32
    %209 = vector.broadcast %c16_i32 : i32 to vector<1x1x32xi32>
    %210 = arith.cmpi slt, %208, %209 : vector<1x1x32xi32>
    %211 = vector.shape_cast %210 : vector<1x1x32xi1> to vector<1x1x32xi1>
    %212 = vector.broadcast %211 : vector<1x1x32xi1> to vector<2x8x32xi1>
    %213 = arith.select %212, %198, %207 : vector<2x8x32xi1>, vector<2x8x32xf32>
    %214 = math.tanh %213 : vector<2x8x32xf32>
    %215 = vector.shape_cast %3 : vector<2x32xf32> to vector<2x1x32xf32>
    %216 = vector.broadcast %215 : vector<2x1x32xf32> to vector<2x8x32xf32>
    %217 = arith.mulf %214, %216 : vector<2x8x32xf32>
    %cst_43 = arith.constant dense<0.000000e+00> : vector<2x8xf32>
    %218 = vector.multi_reduction <add>, %217, %cst_43 [2] : vector<2x8x32xf32> to vector<2x8xf32>
    %cst_44 = arith.constant dense<0xFF800000> : vector<2xf32>
    %219 = vector.multi_reduction <maximumf>, %218, %cst_44 [1] : vector<2x8xf32> to vector<2xf32>
    %220 = vector.shape_cast %219 : vector<2xf32> to vector<2x1xf32>
    %221 = vector.broadcast %220 : vector<2x1xf32> to vector<2x8xf32>
    %222 = arith.subf %218, %221 : vector<2x8xf32>
    %223 = math.exp %222 : vector<2x8xf32>
    %224 = vector.shape_cast %223 : vector<2x8xf32> to vector<2x8x1xf32>
    %225 = vector.broadcast %224 : vector<2x8x1xf32> to vector<2x8x32xf32>
    %226 = arith.mulf %225, %213 : vector<2x8x32xf32>
    %cst_45 = arith.constant dense<0.000000e+00> : vector<2x32xf32>
    %227 = vector.multi_reduction <add>, %226, %cst_45 [1] : vector<2x8x32xf32> to vector<2x32xf32>
    %cst_46 = arith.constant dense<0.000000e+00> : vector<2xf32>
    %228 = vector.multi_reduction <add>, %223, %cst_46 [1] : vector<2x8xf32> to vector<2xf32>
    %229 = vector.shape_cast %228 : vector<2xf32> to vector<2x1xf32>
    %230 = tpu.reciprocal %229 {approx = true} : vector<2x1xf32> -> vector<2x1xf32>
    %231 = vector.broadcast %230 : vector<2x1xf32> to vector<2x32xf32>
    %232 = arith.mulf %227, %231 : vector<2x32xf32>
    %233 = math.tanh %232 : vector<2x32xf32>
    %cst_47 = arith.constant dense<0.000000e+00> : vector<2x12xf32>
    %234 = tpu.matmul %233, %5, %cst_47 {dimension_numbers = #tpu.dot_dimension_numbers<[1], [0], [0], [1], [0, 0, 1, 1], [], []>} : vector<2x32xf32>, vector<32x12xf32>, vector<2x12xf32> -> vector<2x12xf32>
    %235 = arith.addf %234, %4 : vector<2x12xf32>
    %cst_48 = arith.constant dense<0xFF800000> : vector<2xf32>
    %236 = vector.multi_reduction <maximumf>, %235, %cst_48 [1] : vector<2x12xf32> to vector<2xf32>
    %237 = vector.shape_cast %236 : vector<2xf32> to vector<2x1xf32>
    %238 = vector.broadcast %237 : vector<2x1xf32> to vector<2x12xf32>
    %239 = arith.subf %235, %238 : vector<2x12xf32>
    %240 = math.exp %239 : vector<2x12xf32>
    %cst_49 = arith.constant dense<0.000000e+00> : vector<2xf32>
    %241 = vector.multi_reduction <add>, %240, %cst_49 [1] : vector<2x12xf32> to vector<2xf32>
    %242 = vector.shape_cast %241 : vector<2xf32> to vector<2x1xf32>
    %243 = tpu.reciprocal %242 {approx = true} : vector<2x1xf32> -> vector<2x1xf32>
    %244 = vector.broadcast %243 : vector<2x1xf32> to vector<2x12xf32>
    %245 = arith.mulf %240, %244 : vector<2x12xf32>
    %c0_50 = arith.constant 0 : index
    %c0_51 = arith.constant 0 : index
    %246 = vector.load %arg3[%c0_50, %c0_51] : memref<2x12xf32, #tpu.memory_space<vmem>>, vector<2x12xf32>
    tpu.vector_store %arg3[%c0_50, %c0_51], %245 {strides = array<i32>} : memref<2x12xf32, #tpu.memory_space<vmem>>, vector<2x12xf32>,
    return
  }
  func.func @transform_0(%arg0: i32) -> (i32, i32, i32) {
    %c0_i32 = arith.constant 0 : i32
    %c0_i32_0 = arith.constant 0 : i32
    %c0_i32_1 = arith.constant 0 : i32
    %c0_i32_2 = arith.constant 0 : i32
    return %c0_i32, %c0_i32_0, %c0_i32_1 : i32, i32, i32
  }
  func.func @transform_1(%arg0: i32) -> (i32, i32) {
    %c0_i32 = arith.constant 0 : i32
    %c0_i32_0 = arith.constant 0 : i32
    %c0_i32_1 = arith.constant 0 : i32
    return %c0_i32, %c0_i32_0 : i32, i32
  }
  func.func @transform_2(%arg0: i32) -> (i32, i32) {
    %c0_i32 = arith.constant 0 : i32
    %c0_i32_0 = arith.constant 0 : i32
    %c0_i32_1 = arith.constant 0 : i32
    return %c0_i32, %c0_i32_0 : i32, i32
  }
}

</mosaic_0001>

<llo_original>
// kernel: tpu_custom_call.1
$region0: #{tpu_custom_call.1}
  #allocation0 [shape = 'u32[]', space=smem, size = 0x4, offset = 0x4, fixed_abs, tag = 'smem constant byte address 0x4 - core index']
  #allocation1 [shape = 'u32[144,128]{1,0:T(1,128)}', space=vmem, size = 0x12000, scoped, tag = 'internal scratch']
  %s0 = inlined_call_operand.hbm [shape: f32[2,8,96], index: 0, kind: input, shape index: {}]
  %s1 = inlined_call_operand.hbm [shape: f32[184,128], index: 1, kind: input, shape index: {}]
  %s2 = inlined_call_operand.hbm [shape: f32[2,12], index: 2, kind: output, shape index: {}]
  %s3 = sld [smem:[#allocation0]]
  $region26: #{tpu_custom_call.1} parent=0
    _
  %s5 = ssub.s32 1, %s3
  %s6 = scalar_select 0, %s5, %s3
  $region1: #{tpu_custom_call.1} parent=0
    #allocation2 [shape = 'u8[8192]{0}', space=vmem, size = 0x2000, scoped, tag = 'input window, operand 0, single buffered']
    #allocation3 [shape = 's32[1]{0}', space=sflag, size = 0x4, scoped, tag = 'scoped memory for tpu_custom_call.1']
    #allocation4 [shape = 's32[1]{0}', space=sflag, size = 0x4, scoped, tag = 'scoped memory for tpu_custom_call.1']
    #allocation5 [shape = 'u8[94208]{0}', space=vmem, size = 0x17000, scoped, tag = 'input window, operand 1, single buffered']
    #allocation6 [shape = 's32[1]{0}', space=sflag, size = 0x4, scoped, tag = 'scoped memory for tpu_custom_call.1']
    #allocation7 [shape = 'u8[1024]{0}', space=vmem, size = 0x400, scoped, tag = 'output window, operand 0, single buffered']
    %7 = vsyncpa [#allocation3], 0
    %8 = vsyncpa [#allocation6], 0
    %9 = vsyncpa [#allocation4], 0
    // Predicated region
    $region2: #{tpu_custom_call.1} parent=1 // pred_check
      _
    $region3: #{tpu_custom_call.1} parent=1 // pred_check_branch
      %11 = sbr.rel (0) target = $region5
    $region4: #{tpu_custom_call.1} parent=1 // pred_region
      %s13 = ssub.s32 256, 256
      %14 = vsyncadd [#allocation3], %s13
      %s15 = sshll.u32 [#allocation2], 4
      %s16 = int_to_ptr.vmem [resolvable:$true] %s15
      %21 = dma.hbm_to_vmem [thread:$0]  %s0, 256, %s16, [#allocation3], 128, 128, 8
    $region5: #{tpu_custom_call.1} parent=1 // pred_fallthru
      _
    // Predicated region
    $region6: #{tpu_custom_call.1} parent=1 // pred_check
      _
    $region7: #{tpu_custom_call.1} parent=1 // pred_check_branch
      %23 = sbr.rel (0) target = $region9
    $region8: #{tpu_custom_call.1} parent=1 // pred_region
      %s25 = ssub.s32 2944, 2944
      %26 = vsyncadd [#allocation6], %s25
      %s27 = sshll.u32 [#allocation5], 4
      %s28 = int_to_ptr.vmem [resolvable:$true] %s27
      %33 = dma.hbm_to_vmem [thread:$0]  %s1, 2944, %s28, [#allocation6], 128, 128, 8
    $region9: #{tpu_custom_call.1} parent=1 // pred_fallthru
      _
    // Predicated region
    $region10: #{tpu_custom_call.1} parent=1 // pred_check
      _
    $region11: #{tpu_custom_call.1} parent=1 // pred_check_branch
      %35 = sbr.rel (0) target = $region13
    $region12: #{tpu_custom_call.1} parent=1 // pred_region
      %36 = dma.done [#allocation3], 256
    $region13: #{tpu_custom_call.1} parent=1 // pred_fallthru
      _
    // Predicated region
    $region14: #{tpu_custom_call.1} parent=1 // pred_check
      _
    $region15: #{tpu_custom_call.1} parent=1 // pred_check_branch
      %38 = sbr.rel (0) target = $region17
    $region16: #{tpu_custom_call.1} parent=1 // pred_region
      %39 = dma.done [#allocation6], 2944
    $region17: #{tpu_custom_call.1} parent=1 // pred_fallthru
      _
    %v40 = vld [vmem:[#allocation5] sm:$0xff]
    %v41 = vld [vmem:[#allocation5 + $0x8] sm:$0xff]
    %v42 = vld [vmem:[#allocation5 + $0x10] sm:$0xff]
    %v43 = vld [vmem:[#allocation5 + $0x18] sm:$0xff]
    %v44 = vld [vmem:[#allocation5 + $0x20] sm:$0xff]
    %v45 = vld [vmem:[#allocation5 + $0x28] sm:$0xff]
    %v46 = vld [vmem:[#allocation5 + $0x30] sm:$0xff]
    %v47 = vld [vmem:[#allocation5 + $0x38] sm:$0xff]
    %v48 = vld [vmem:[#allocation5 + $0x40] sm:$0xff]
    %v49 = vld [vmem:[#allocation5 + $0x48] sm:$0xff]
    %v50 = vld [vmem:[#allocation5 + $0x50] sm:$0xff]
    %v51 = vld [vmem:[#allocation5 + $0x58] sm:$0xff]
    %v52 = vld [vmem:[#allocation5 + $0x60] sm:$0xff]
    %v53 = vld [vmem:[#allocation5 + $0x68] sm:$0xff]
    %v54 = vld [vmem:[#allocation5 + $0x70] sm:$0xff]
    %v55 = vld [vmem:[#allocation5 + $0x78] sm:$0xff]
    %v56 = vld [vmem:[#allocation5 + $0x80] sm:$0x1]
    %v57 = vld [vmem:[#allocation5 + $0x88] sm:$0x3]
    %v58 = vld [vmem:[#allocation5 + $0x90] sm:$0x3]
    %v59 = vld [vmem:[#allocation5 + $0x98] sm:$0xff]
    %v60 = vld [vmem:[#allocation5 + $0xa0] sm:$0xff]
    %v61 = vld [vmem:[#allocation5 + $0xa8] sm:$0xff]
    %v62 = vld [vmem:[#allocation5 + $0xb0] sm:$0xff]
    %v63 = vld [vmem:[#allocation2] sm:$0xff]
    %v64 = vld [vmem:[#allocation2 + $0x8] sm:$0xff]
    %v65 = vlaneseq
    %v66 = vshrl.u32 %v65, 7
    %v67 = vsub.s32 0, %v66
    %v68 = vrot.slane %v56, %v67
    %vm69 = vcmask 785408
    %v71 = vsel %vm69, %v63, 0
    %v74 = vsel %vm69, %v64, 0
    %76 = vmatprep.subr.mxu0 0.0
    %77 = vmatpush1.msra.mxu0 %v40
    %78 = vmatprep.subr.mxu0 0.0
    %79 = vmatpush1.msra.mxu0 %v41
    %80 = vmatprep.subr.mxu0 0.0
    %81 = vmatpush1.msra.mxu0 %v42
    %82 = vmatprep.subr.mxu0 0.0
    %83 = vmatpush1.msra.mxu0 %v43
    %84 = vmatprep.subr.mxu0 0.0
    %85 = vmatpush1.msra.mxu0 %v44
    %86 = vmatprep.subr.mxu0 0.0
    %87 = vmatpush1.msra.mxu0 %v45
    %88 = vmatprep.subr.mxu0 0.0
    %89 = vmatpush1.msra.mxu0 %v46
    %90 = vmatprep.subr.mxu0 0.0
    %91 = vmatpush1.msra.mxu0 %v47
    %92 = vmatprep.subr.mxu0 0.0
    %93 = vmatpush1.msra.mxu0 %v48
    %94 = vmatprep.subr.mxu0 0.0
    %95 = vmatpush1.msra.mxu0 %v49
    %96 = vmatprep.subr.mxu0 0.0
    %97 = vmatpush1.msra.mxu0 %v50
    %98 = vmatprep.subr.mxu0 0.0
    %99 = vmatpush1.msra.mxu0 %v51
    %100 = vmatprep.subr.mxu0 0.0
    %101 = vmatpush1.msra.mxu0 0.0
    %102 = vmatprep.subr.mxu0 0.0
    %103 = vmatpush1.msra.mxu0 0.0
    %104 = vmatprep.subr.mxu0 0.0
    %105 = vmatpush1.msra.mxu0 0.0
    %106 = vmatprep.subr.mxu0 0.0
    %107 = vmatpush1.msra.mxu0 0.0
    %108 = vmatprep.subr.mxu0 0.0
    %109 = vmatpush1.msra.mxu0 0.0
    %110 = vmatprep.subr.mxu0 0.0
    %111 = vmatpush1.msra.mxu0 0.0
    %112 = vmatprep.subr.mxu0 0.0
    %113 = vmatpush1.msra.mxu0 0.0
    %114 = vmatprep.subr.mxu0 0.0
    %115 = vmatpush1.msra.mxu0 0.0
    %116 = vmatprep.subr.mxu0 0.0
    %117 = vmatpush1.msra.mxu0 0.0
    %118 = vmatprep.subr.mxu0 0.0
    %119 = vmatpush1.msra.mxu0 0.0
    %120 = vmatprep.subr.mxu0 0.0
    %121 = vmatpush1.msra.mxu0 0.0
    %122 = vmatprep.subr.mxu0 0.0
    %123 = vmatpush1.msra.mxu0 0.0
    %124 = vmatprep.subr.mxu0 0.0
    %125 = vmatpush1.msra.mxu0 0.0
    %126 = vmatprep.subr.mxu0 0.0
    %127 = vmatpush1.msra.mxu0 0.0
    %128 = vmatprep.subr.mxu0 0.0
    %129 = vmatpush1.msra.mxu0 0.0
    %130 = vmatprep.subr.mxu0 0.0
    %131 = vmatpush1.msra.mxu0 0.0
    %132 = vmatprep.subr.mxu0 0.0
    %133 = vmatpush1.msra.mxu0 0.0
    %134 = vmatprep.subr.mxu0 0.0
    %135 = vmatpush1.msra.mxu0 0.0
    %136 = vmatprep.subr.mxu0 0.0
    %137 = vmatpush1.msra.mxu0 0.0
    %138 = vmatprep.subr.mxu0 0.0
    %139 = vmatpush1.msra.mxu0 0.0
    %140 = vmatprep.mubr.f32.mxu0 0.0
    %141 = vmatmul.mubr.f32.gmra.mrb[0].mxu0 %v71
    %v142 = vpop.f32.mrb[0].mxu0
    %v143 = vadd.f32 %v68, %v142
    %v144 = vpop.f32.mrb[0].mxu0
    %145 = vmatprep.mubr.f32.mxu0 0.0
    %146 = vmatmul.mubr.f32.gmra.mrb[0].mxu0 %v74
    %v147 = vpop.f32.mrb[0].mxu0
    %v148 = vadd.f32 %v68, %v147
    %v149 = vpop.f32.mrb[0].mxu0
    %150 = vdwg.mxu0
    %vm151 = vcmask 261120
    %v153 = vsel %vm151, 0.0, 0
    %155 = vmatprep.subr.mxu0 0.0
    %156 = vmatpush1.msra.mxu0 %v52
    %157 = vmatprep.subr.mxu0 0.0
    %158 = vmatpush1.msra.mxu0 %v53
    %159 = vmatprep.subr.mxu0 0.0
    %160 = vmatpush1.msra.mxu0 %v54
    %161 = vmatprep.subr.mxu0 0.0
    %162 = vmatpush1.msra.mxu0 %v55
    %163 = vmatprep.subr.mxu0 0.0
    %164 = vmatpush1.msra.mxu0 0.0
    %165 = vmatprep.subr.mxu0 0.0
    %166 = vmatpush1.msra.mxu0 0.0
    %167 = vmatprep.subr.mxu0 0.0
    %168 = vmatpush1.msra.mxu0 0.0
    %169 = vmatprep.subr.mxu0 0.0
    %170 = vmatpush1.msra.mxu0 0.0
    %171 = vmatprep.subr.mxu0 0.0
    %172 = vmatpush1.msra.mxu0 0.0
    %173 = vmatprep.subr.mxu0 0.0
    %174 = vmatpush1.msra.mxu0 0.0
    %175 = vmatprep.subr.mxu0 0.0
    %176 = vmatpush1.msra.mxu0 0.0
    %177 = vmatprep.subr.mxu0 0.0
    %178 = vmatpush1.msra.mxu0 0.0
    %179 = vmatprep.subr.mxu0 0.0
    %180 = vmatpush1.msra.mxu0 0.0
    %181 = vmatprep.subr.mxu0 0.0
    %182 = vmatpush1.msra.mxu0 0.0
    %183 = vmatprep.subr.mxu0 0.0
    %184 = vmatpush1.msra.mxu0 0.0
    %185 = vmatprep.subr.mxu0 0.0
    %186 = vmatpush1.msra.mxu0 0.0
    %187 = vmatprep.subr.mxu0 0.0
    %188 = vmatpush1.msra.mxu0 0.0
    %189 = vmatprep.subr.mxu0 0.0
    %190 = vmatpush1.msra.mxu0 0.0
    %191 = vmatprep.subr.mxu0 0.0
    %192 = vmatpush1.msra.mxu0 0.0
    %193 = vmatprep.subr.mxu0 0.0
    %194 = vmatpush1.msra.mxu0 0.0
    %195 = vmatprep.subr.mxu0 0.0
    %196 = vmatpush1.msra.mxu0 0.0
    %197 = vmatprep.subr.mxu0 0.0
    %198 = vmatpush1.msra.mxu0 0.0
    %199 = vmatprep.subr.mxu0 0.0
    %200 = vmatpush1.msra.mxu0 0.0
    %201 = vmatprep.subr.mxu0 0.0
    %202 = vmatpush1.msra.mxu0 0.0
    %203 = vmatprep.subr.mxu0 0.0
    %204 = vmatpush1.msra.mxu0 0.0
    %205 = vmatprep.subr.mxu0 0.0
    %206 = vmatpush1.msra.mxu0 0.0
    %207 = vmatprep.subr.mxu0 0.0
    %208 = vmatpush1.msra.mxu0 0.0
    %209 = vmatprep.subr.mxu0 0.0
    %210 = vmatpush1.msra.mxu0 0.0
    %211 = vmatprep.subr.mxu0 0.0
    %212 = vmatpush1.msra.mxu0 0.0
    %213 = vmatprep.subr.mxu0 0.0
    %214 = vmatpush1.msra.mxu0 0.0
    %215 = vmatprep.subr.mxu0 0.0
    %216 = vmatpush1.msra.mxu0 0.0
    %217 = vmatprep.subr.mxu0 0.0
    %218 = vmatpush1.msra.mxu0 0.0
    %219 = vmatprep.mubr.f32.mxu0 0.0
    %220 = vmatmul.mubr.f32.gmra.mrb[0].mxu0 %v153
    %v221 = vpop.f32.mrb[0].mxu0
    %v222 = vadd.f32 0.0, %v221
    %v223 = vpop.f32.mrb[0].mxu0
    %224 = vdwg.mxu0
    %v226 = vrot.slane %v222, 1
    %v229 = vadd.f32 %v143, %v222
    %v230 = vadd.f32 %v148, %v226
    %v231 = vxor.u32 %v229, 2147483648
    %v232 = vxor.u32 %v230, 2147483648
    %v233 = vmul.f32 %v231, 1.442695
    %v234 = vpow.pop %v233
    %v235 = vmul.f32 %v232, 1.442695
    %v236 = vpow.pop %v235
    %v237 = vadd.f32 %v234, 1.0
    %v238 = vadd.f32 %v236, 1.0
    %v239 = vrcp.pop %v237
    %v240 = vmul.f32 1.0, %v239
    %v241 = vrcp.pop %v238
    %v242 = vmul.f32 1.0, %v241
    %v243 = vmul.f32 %v240, 2.0
    %v244 = vmul.f32 %v242, 2.0
    %v245 = vsub.f32 %v243, 1.0
    %v246 = vsub.f32 %v244, 1.0
    %v247 = vmul.f32 %v240, 0.0
    %v248 = vmul.f32 %v242, 0.0
    %251 = vrot.lane.b32.xlu0 %v245, 64
    %v252 = vpop.permute.xlu0 %251
    %253 = vrot.lane.b32.xlu0 %v246, 64
    %v254 = vpop.permute.xlu0 %253
    %v257 = vmul.f32 %v240, %v252
    %v258 = vmul.f32 %v242, %v254
    %261 = vrot.lane.b32.xlu0 %v257, 32
    %v262 = vpop.permute.xlu0 %261
    %263 = vrot.lane.b32.xlu0 %v258, 32
    %v264 = vpop.permute.xlu0 %263
    %v267 = vadd.f32 %v247, %v262
    %v268 = vadd.f32 %v248, %v264
    %v269 = vtanh.pop %v267
    %v270 = vtanh.pop %v268
    %273 = vrot.lane.b32.xlu0 %v269, 64
    %v274 = vpop.permute.xlu0 %273
    %275 = vrot.lane.b32.xlu0 %v270, 64
    %v276 = vpop.permute.xlu0 %275
    %v279 = vmul.f32 %v240, %v274
    %v280 = vmul.f32 %v242, %v276
    %v283 = vrot.slane %v280, 7
    %vm284 = vcmask 1041409
    %v285 = vsel %vm284, %v283, %v279
    %286 = vrot.lane.b32.xlu0 %v285, 32
    %v287 = vpop.permute.xlu0 %286
    %v288 = vsel %vm151, %v287, 0
    %290 = vmatprep.subr.mxu0 0.0
    %291 = vmatpush1.msra.mxu0 %v52
    %292 = vmatprep.subr.mxu0 0.0
    %293 = vmatpush1.msra.mxu0 %v53
    %294 = vmatprep.subr.mxu0 0.0
    %295 = vmatpush1.msra.mxu0 %v54
    %296 = vmatprep.subr.mxu0 0.0
    %297 = vmatpush1.msra.mxu0 %v55
    %298 = vmatprep.subr.mxu0 0.0
    %299 = vmatpush1.msra.mxu0 0.0
    %300 = vmatprep.subr.mxu0 0.0
    %301 = vmatpush1.msra.mxu0 0.0
    %302 = vmatprep.subr.mxu0 0.0
    %303 = vmatpush1.msra.mxu0 0.0
    %304 = vmatprep.subr.mxu0 0.0
    %305 = vmatpush1.msra.mxu0 0.0
    %306 = vmatprep.subr.mxu0 0.0
    %307 = vmatpush1.msra.mxu0 0.0
    %308 = vmatprep.subr.mxu0 0.0
    %309 = vmatpush1.msra.mxu0 0.0
    %310 = vmatprep.subr.mxu0 0.0
    %311 = vmatpush1.msra.mxu0 0.0
    %312 = vmatprep.subr.mxu0 0.0
    %313 = vmatpush1.msra.mxu0 0.0
    %314 = vmatprep.subr.mxu0 0.0
    %315 = vmatpush1.msra.mxu0 0.0
    %316 = vmatprep.subr.mxu0 0.0
    %317 = vmatpush1.msra.mxu0 0.0
    %318 = vmatprep.subr.mxu0 0.0
    %319 = vmatpush1.msra.mxu0 0.0
    %320 = vmatprep.subr.mxu0 0.0
    %321 = vmatpush1.msra.mxu0 0.0
    %322 = vmatprep.subr.mxu0 0.0
    %323 = vmatpush1.msra.mxu0 0.0
    %324 = vmatprep.subr.mxu0 0.0
    %325 = vmatpush1.msra.mxu0 0.0
    %326 = vmatprep.subr.mxu0 0.0
    %327 = vmatpush1.msra.mxu0 0.0
    %328 = vmatprep.subr.mxu0 0.0
    %329 = vmatpush1.msra.mxu0 0.0
    %330 = vmatprep.subr.mxu0 0.0
    %331 = vmatpush1.msra.mxu0 0.0
    %332 = vmatprep.subr.mxu0 0.0
    %333 = vmatpush1.msra.mxu0 0.0
    %334 = vmatprep.subr.mxu0 0.0
    %335 = vmatpush1.msra.mxu0 0.0
    %336 = vmatprep.subr.mxu0 0.0
    %337 = vmatpush1.msra.mxu0 0.0
    %338 = vmatprep.subr.mxu0 0.0
    %339 = vmatpush1.msra.mxu0 0.0
    %340 = vmatprep.subr.mxu0 0.0
    %341 = vmatpush1.msra.mxu0 0.0
    %342 = vmatprep.subr.mxu0 0.0
    %343 = vmatpush1.msra.mxu0 0.0
    %344 = vmatprep.subr.mxu0 0.0
    %345 = vmatpush1.msra.mxu0 0.0
    %346 = vmatprep.subr.mxu0 0.0
    %347 = vmatpush1.msra.mxu0 0.0
    %348 = vmatprep.subr.mxu0 0.0
    %349 = vmatpush1.msra.mxu0 0.0
    %350 = vmatprep.subr.mxu0 0.0
    %351 = vmatpush1.msra.mxu0 0.0
    %352 = vmatprep.subr.mxu0 0.0
    %353 = vmatpush1.msra.mxu0 0.0
    %354 = vmatprep.mubr.f32.mxu0 0.0
    %355 = vmatmul.mubr.f32.gmra.mrb[0].mxu0 %v288
    %v356 = vpop.f32.mrb[0].mxu0
    %v357 = vadd.f32 0.0, %v356
    %v358 = vpop.f32.mrb[0].mxu0
    %359 = vdwg.mxu0
    %v361 = vrot.slane %v357, 7
    %v364 = vadd.f32 %v143, %v361
    %v365 = vadd.f32 %v148, %v357
    %v366 = vxor.u32 %v364, 2147483648
    %v367 = vxor.u32 %v365, 2147483648
    %v368 = vmul.f32 %v366, 1.442695
    %v369 = vpow.pop %v368
    %v370 = vmul.f32 %v367, 1.442695
    %v371 = vpow.pop %v370
    %v372 = vadd.f32 %v369, 1.0
    %v373 = vadd.f32 %v371, 1.0
    %v374 = vrcp.pop %v372
    %v375 = vmul.f32 1.0, %v374
    %v376 = vrcp.pop %v373
    %v377 = vmul.f32 1.0, %v376
    %v378 = vmul.f32 %v375, 2.0
    %v379 = vmul.f32 %v377, 2.0
    %v380 = vsub.f32 %v378, 1.0
    %v381 = vsub.f32 %v379, 1.0
    %v384 = vrot.slane %v267, 7
    %v385 = vrot.slane %v268, 7
    %v388 = vmul.f32 %v375, %v384
    %v389 = vmul.f32 %v377, %v385
    %392 = vrot.lane.b32.xlu0 %v380, 64
    %v393 = vpop.permute.xlu0 %392
    %394 = vrot.lane.b32.xlu0 %v381, 64
    %v395 = vpop.permute.xlu0 %394
    %v398 = vmul.f32 %v375, %v393
    %v399 = vmul.f32 %v377, %v395
    %402 = vrot.lane.b32.xlu0 %v398, 32
    %v403 = vpop.permute.xlu0 %402
    %404 = vrot.lane.b32.xlu0 %v399, 32
    %v405 = vpop.permute.xlu0 %404
    %v408 = vadd.f32 %v388, %v403
    %v409 = vadd.f32 %v389, %v405
    %v410 = vtanh.pop %v408
    %v411 = vtanh.pop %v409
    %414 = vrot.lane.b32.xlu0 %v410, 64
    %v415 = vpop.permute.xlu0 %414
    %416 = vrot.lane.b32.xlu0 %v411, 64
    %v417 = vpop.permute.xlu0 %416
    %v420 = vmul.f32 %v375, %v415
    %v421 = vmul.f32 %v377, %v417
    %v424 = vrot.slane %v420, 1
    %v425 = vsel %vm284, %v421, %v424
    %426 = vrot.lane.b32.xlu0 %v425, 32
    %v427 = vpop.permute.xlu0 %426
    %v428 = vsel %vm151, %v427, 0
    %430 = vmatprep.subr.mxu0 0.0
    %431 = vmatpush1.msra.mxu0 %v52
    %432 = vmatprep.subr.mxu0 0.0
    %433 = vmatpush1.msra.mxu0 %v53
    %434 = vmatprep.subr.mxu0 0.0
    %435 = vmatpush1.msra.mxu0 %v54
    %436 = vmatprep.subr.mxu0 0.0
    %437 = vmatpush1.msra.mxu0 %v55
    %438 = vmatprep.subr.mxu0 0.0
    %439 = vmatpush1.msra.mxu0 0.0
    %440 = vmatprep.subr.mxu0 0.0
    %441 = vmatpush1.msra.mxu0 0.0
    %442 = vmatprep.subr.mxu0 0.0
    %443 = vmatpush1.msra.mxu0 0.0
    %444 = vmatprep.subr.mxu0 0.0
    %445 = vmatpush1.msra.mxu0 0.0
    %446 = vmatprep.subr.mxu0 0.0
    %447 = vmatpush1.msra.mxu0 0.0
    %448 = vmatprep.subr.mxu0 0.0
    %449 = vmatpush1.msra.mxu0 0.0
    %450 = vmatprep.subr.mxu0 0.0
    %451 = vmatpush1.msra.mxu0 0.0
    %452 = vmatprep.subr.mxu0 0.0
    %453 = vmatpush1.msra.mxu0 0.0
    %454 = vmatprep.subr.mxu0 0.0
    %455 = vmatpush1.msra.mxu0 0.0
    %456 = vmatprep.subr.mxu0 0.0
    %457 = vmatpush1.msra.mxu0 0.0
    %458 = vmatprep.subr.mxu0 0.0
    %459 = vmatpush1.msra.mxu0 0.0
    %460 = vmatprep.subr.mxu0 0.0
    %461 = vmatpush1.msra.mxu0 0.0
    %462 = vmatprep.subr.mxu0 0.0
    %463 = vmatpush1.msra.mxu0 0.0
    %464 = vmatprep.subr.mxu0 0.0
    %465 = vmatpush1.msra.mxu0 0.0
    %466 = vmatprep.subr.mxu0 0.0
    %467 = vmatpush1.msra.mxu0 0.0
    %468 = vmatprep.subr.mxu0 0.0
    %469 = vmatpush1.msra.mxu0 0.0
    %470 = vmatprep.subr.mxu0 0.0
    %471 = vmatpush1.msra.mxu0 0.0
    %472 = vmatprep.subr.mxu0 0.0
    %473 = vmatpush1.msra.mxu0 0.0
    %474 = vmatprep.subr.mxu0 0.0
    %475 = vmatpush1.msra.mxu0 0.0
    %476 = vmatprep.subr.mxu0 0.0
    %477 = vmatpush1.msra.mxu0 0.0
    %478 = vmatprep.subr.mxu0 0.0
    %479 = vmatpush1.msra.mxu0 0.0
    %480 = vmatprep.subr.mxu0 0.0
    %481 = vmatpush1.msra.mxu0 0.0
    %482 = vmatprep.subr.mxu0 0.0
    %483 = vmatpush1.msra.mxu0 0.0
    %484 = vmatprep.subr.mxu0 0.0
    %485 = vmatpush1.msra.mxu0 0.0
    %486 = vmatprep.subr.mxu0 0.0
    %487 = vmatpush1.msra.mxu0 0.0
    %488 = vmatprep.subr.mxu0 0.0
    %489 = vmatpush1.msra.mxu0 0.0
    %490 = vmatprep.subr.mxu0 0.0
    %491 = vmatpush1.msra.mxu0 0.0
    %492 = vmatprep.subr.mxu0 0.0
    %493 = vmatpush1.msra.mxu0 0.0
    %494 = vmatprep.mubr.f32.mxu0 0.0
    %495 = vmatmul.mubr.f32.gmra.mrb[0].mxu0 %v428
    %v496 = vpop.f32.mrb[0].mxu0
    %v497 = vadd.f32 0.0, %v496
    %v498 = vpop.f32.mrb[0].mxu0
    %499 = vdwg.mxu0
    %v501 = vrot.slane %v497, 6
    %v502 = vrot.slane %v497, 7
    %v505 = vadd.f32 %v143, %v501
    %v506 = vadd.f32 %v148, %v502
    %v507 = vxor.u32 %v505, 2147483648
    %v508 = vxor.u32 %v506, 2147483648
    %v509 = vmul.f32 %v507, 1.442695
    %v510 = vpow.pop %v509
    %v511 = vmul.f32 %v508, 1.442695
    %v512 = vpow.pop %v511
    %v513 = vadd.f32 %v510, 1.0
    %v514 = vadd.f32 %v512, 1.0
    %v515 = vrcp.pop %v513
    %v516 = vmul.f32 1.0, %v515
    %v517 = vrcp.pop %v514
    %v518 = vmul.f32 1.0, %v517
    %v519 = vmul.f32 %v516, 2.0
    %v520 = vmul.f32 %v518, 2.0
    %v521 = vsub.f32 %v519, 1.0
    %v522 = vsub.f32 %v520, 1.0
    %v525 = vrot.slane %v408, 7
    %v526 = vrot.slane %v409, 7
    %v529 = vmul.f32 %v516, %v525
    %v530 = vmul.f32 %v518, %v526
    %533 = vrot.lane.b32.xlu0 %v521, 64
    %v534 = vpop.permute.xlu0 %533
    %535 = vrot.lane.b32.xlu0 %v522, 64
    %v536 = vpop.permute.xlu0 %535
    %v539 = vmul.f32 %v516, %v534
    %v540 = vmul.f32 %v518, %v536
    %543 = vrot.lane.b32.xlu0 %v539, 32
    %v544 = vpop.permute.xlu0 %543
    %545 = vrot.lane.b32.xlu0 %v540, 32
    %v546 = vpop.permute.xlu0 %545
    %v549 = vadd.f32 %v529, %v544
    %v550 = vadd.f32 %v530, %v546
    %v551 = vtanh.pop %v549
    %v552 = vtanh.pop %v550
    %555 = vrot.lane.b32.xlu0 %v551, 64
    %v556 = vpop.permute.xlu0 %555
    %557 = vrot.lane.b32.xlu0 %v552, 64
    %v558 = vpop.permute.xlu0 %557
    %v561 = vmul.f32 %v516, %v556
    %v562 = vmul.f32 %v518, %v558
    %v565 = vrot.slane %v561, 2
    %v566 = vrot.slane %v562, 1
    %v567 = vsel %vm284, %v566, %v565
    %568 = vrot.lane.b32.xlu0 %v567, 32
    %v569 = vpop.permute.xlu0 %568
    %v570 = vsel %vm151, %v569, 0
    %572 = vmatprep.subr.mxu0 0.0
    %573 = vmatpush1.msra.mxu0 %v52
    %574 = vmatprep.subr.mxu0 0.0
    %575 = vmatpush1.msra.mxu0 %v53
    %576 = vmatprep.subr.mxu0 0.0
    %577 = vmatpush1.msra.mxu0 %v54
    %578 = vmatprep.subr.mxu0 0.0
    %579 = vmatpush1.msra.mxu0 %v55
    %580 = vmatprep.subr.mxu0 0.0
    %581 = vmatpush1.msra.mxu0 0.0
    %582 = vmatprep.subr.mxu0 0.0
    %583 = vmatpush1.msra.mxu0 0.0
    %584 = vmatprep.subr.mxu0 0.0
    %585 = vmatpush1.msra.mxu0 0.0
    %586 = vmatprep.subr.mxu0 0.0
    %587 = vmatpush1.msra.mxu0 0.0
    %588 = vmatprep.subr.mxu0 0.0
    %589 = vmatpush1.msra.mxu0 0.0
    %590 = vmatprep.subr.mxu0 0.0
    %591 = vmatpush1.msra.mxu0 0.0
    %592 = vmatprep.subr.mxu0 0.0
    %593 = vmatpush1.msra.mxu0 0.0
    %594 = vmatprep.subr.mxu0 0.0
    %595 = vmatpush1.msra.mxu0 0.0
    %596 = vmatprep.subr.mxu0 0.0
    %597 = vmatpush1.msra.mxu0 0.0
    %598 = vmatprep.subr.mxu0 0.0
    %599 = vmatpush1.msra.mxu0 0.0
    %600 = vmatprep.subr.mxu0 0.0
    %601 = vmatpush1.msra.mxu0 0.0
    %602 = vmatprep.subr.mxu0 0.0
    %603 = vmatpush1.msra.mxu0 0.0
    %604 = vmatprep.subr.mxu0 0.0
    %605 = vmatpush1.msra.mxu0 0.0
    %606 = vmatprep.subr.mxu0 0.0
    %607 = vmatpush1.msra.mxu0 0.0
    %608 = vmatprep.subr.mxu0 0.0
    %609 = vmatpush1.msra.mxu0 0.0
    %610 = vmatprep.subr.mxu0 0.0
    %611 = vmatpush1.msra.mxu0 0.0
    %612 = vmatprep.subr.mxu0 0.0
    %613 = vmatpush1.msra.mxu0 0.0
    %614 = vmatprep.subr.mxu0 0.0
    %615 = vmatpush1.msra.mxu0 0.0
    %616 = vmatprep.subr.mxu0 0.0
    %617 = vmatpush1.msra.mxu0 0.0
    %618 = vmatprep.subr.mxu0 0.0
    %619 = vmatpush1.msra.mxu0 0.0
    %620 = vmatprep.subr.mxu0 0.0
    %621 = vmatpush1.msra.mxu0 0.0
    %622 = vmatprep.subr.mxu0 0.0
    %623 = vmatpush1.msra.mxu0 0.0
    %624 = vmatprep.subr.mxu0 0.0
    %625 = vmatpush1.msra.mxu0 0.0
    %626 = vmatprep.subr.mxu0 0.0
    %627 = vmatpush1.msra.mxu0 0.0
    %628 = vmatprep.subr.mxu0 0.0
    %629 = vmatpush1.msra.mxu0 0.0
    %630 = vmatprep.subr.mxu0 0.0
    %631 = vmatpush1.msra.mxu0 0.0
    %632 = vmatprep.subr.mxu0 0.0
    %633 = vmatpush1.msra.mxu0 0.0
    %634 = vmatprep.subr.mxu0 0.0
    %635 = vmatpush1.msra.mxu0 0.0
    %636 = vmatprep.mubr.f32.mxu0 0.0
    %637 = vmatmul.mubr.f32.gmra.mrb[0].mxu0 %v570
    %v638 = vpop.f32.mrb[0].mxu0
    %v639 = vadd.f32 0.0, %v638
    %v640 = vpop.f32.mrb[0].mxu0
    %641 = vdwg.mxu0
    %v643 = vrot.slane %v639, 5
    %v644 = vrot.slane %v639, 6
    %v647 = vadd.f32 %v143, %v643
    %v648 = vadd.f32 %v148, %v644
    %v649 = vxor.u32 %v647, 2147483648
    %v650 = vxor.u32 %v648, 2147483648
    %v651 = vmul.f32 %v649, 1.442695
    %v652 = vpow.pop %v651
    %v653 = vmul.f32 %v650, 1.442695
    %v654 = vpow.pop %v653
    %v655 = vadd.f32 %v652, 1.0
    %v656 = vadd.f32 %v654, 1.0
    %v657 = vrcp.pop %v655
    %v658 = vmul.f32 1.0, %v657
    %v659 = vrcp.pop %v656
    %v660 = vmul.f32 1.0, %v659
    %v661 = vmul.f32 %v658, 2.0
    %v662 = vmul.f32 %v660, 2.0
    %v663 = vsub.f32 %v661, 1.0
    %v664 = vsub.f32 %v662, 1.0
    %v667 = vrot.slane %v549, 7
    %v668 = vrot.slane %v550, 7
    %v671 = vmul.f32 %v658, %v667
    %v672 = vmul.f32 %v660, %v668
    %675 = vrot.lane.b32.xlu0 %v663, 64
    %v676 = vpop.permute.xlu0 %675
    %677 = vrot.lane.b32.xlu0 %v664, 64
    %v678 = vpop.permute.xlu0 %677
    %v681 = vmul.f32 %v658, %v676
    %v682 = vmul.f32 %v660, %v678
    %685 = vrot.lane.b32.xlu0 %v681, 32
    %v686 = vpop.permute.xlu0 %685
    %687 = vrot.lane.b32.xlu0 %v682, 32
    %v688 = vpop.permute.xlu0 %687
    %v691 = vadd.f32 %v671, %v686
    %v692 = vadd.f32 %v672, %v688
    %v693 = vtanh.pop %v691
    %v694 = vtanh.pop %v692
    %697 = vrot.lane.b32.xlu0 %v693, 64
    %v698 = vpop.permute.xlu0 %697
    %699 = vrot.lane.b32.xlu0 %v694, 64
    %v700 = vpop.permute.xlu0 %699
    %v703 = vmul.f32 %v658, %v698
    %v704 = vmul.f32 %v660, %v700
    %v707 = vrot.slane %v703, 3
    %v708 = vrot.slane %v704, 2
    %v709 = vsel %vm284, %v708, %v707
    %710 = vrot.lane.b32.xlu0 %v709, 32
    %v711 = vpop.permute.xlu0 %710
    %v712 = vsel %vm151, %v711, 0
    %714 = vmatprep.subr.mxu0 0.0
    %715 = vmatpush1.msra.mxu0 %v52
    %716 = vmatprep.subr.mxu0 0.0
    %717 = vmatpush1.msra.mxu0 %v53
    %718 = vmatprep.subr.mxu0 0.0
    %719 = vmatpush1.msra.mxu0 %v54
    %720 = vmatprep.subr.mxu0 0.0
    %721 = vmatpush1.msra.mxu0 %v55
    %722 = vmatprep.subr.mxu0 0.0
    %723 = vmatpush1.msra.mxu0 0.0
    %724 = vmatprep.subr.mxu0 0.0
    %725 = vmatpush1.msra.mxu0 0.0
    %726 = vmatprep.subr.mxu0 0.0
    %727 = vmatpush1.msra.mxu0 0.0
    %728 = vmatprep.subr.mxu0 0.0
    %729 = vmatpush1.msra.mxu0 0.0
    %730 = vmatprep.subr.mxu0 0.0
    %731 = vmatpush1.msra.mxu0 0.0
    %732 = vmatprep.subr.mxu0 0.0
    %733 = vmatpush1.msra.mxu0 0.0
    %734 = vmatprep.subr.mxu0 0.0
    %735 = vmatpush1.msra.mxu0 0.0
    %736 = vmatprep.subr.mxu0 0.0
    %737 = vmatpush1.msra.mxu0 0.0
    %738 = vmatprep.subr.mxu0 0.0
    %739 = vmatpush1.msra.mxu0 0.0
    %740 = vmatprep.subr.mxu0 0.0
    %741 = vmatpush1.msra.mxu0 0.0
    %742 = vmatprep.subr.mxu0 0.0
    %743 = vmatpush1.msra.mxu0 0.0
    %744 = vmatprep.subr.mxu0 0.0
    %745 = vmatpush1.msra.mxu0 0.0
    %746 = vmatprep.subr.mxu0 0.0
    %747 = vmatpush1.msra.mxu0 0.0
    %748 = vmatprep.subr.mxu0 0.0
    %749 = vmatpush1.msra.mxu0 0.0
    %750 = vmatprep.subr.mxu0 0.0
    %751 = vmatpush1.msra.mxu0 0.0
    %752 = vmatprep.subr.mxu0 0.0
    %753 = vmatpush1.msra.mxu0 0.0
    %754 = vmatprep.subr.mxu0 0.0
    %755 = vmatpush1.msra.mxu0 0.0
    %756 = vmatprep.subr.mxu0 0.0
    %757 = vmatpush1.msra.mxu0 0.0
    %758 = vmatprep.subr.mxu0 0.0
    %759 = vmatpush1.msra.mxu0 0.0
    %760 = vmatprep.subr.mxu0 0.0
    %761 = vmatpush1.msra.mxu0 0.0
    %762 = vmatprep.subr.mxu0 0.0
    %763 = vmatpush1.msra.mxu0 0.0
    %764 = vmatprep.subr.mxu0 0.0
    %765 = vmatpush1.msra.mxu0 0.0
    %766 = vmatprep.subr.mxu0 0.0
    %767 = vmatpush1.msra.mxu0 0.0
    %768 = vmatprep.subr.mxu0 0.0
    %769 = vmatpush1.msra.mxu0 0.0
    %770 = vmatprep.subr.mxu0 0.0
    %771 = vmatpush1.msra.mxu0 0.0
    %772 = vmatprep.subr.mxu0 0.0
    %773 = vmatpush1.msra.mxu0 0.0
    %774 = vmatprep.subr.mxu0 0.0
    %775 = vmatpush1.msra.mxu0 0.0
    %776 = vmatprep.subr.mxu0 0.0
    %777 = vmatpush1.msra.mxu0 0.0
    %778 = vmatprep.mubr.f32.mxu0 0.0
    %779 = vmatmul.mubr.f32.gmra.mrb[0].mxu0 %v712
    %v780 = vpop.f32.mrb[0].mxu0
    %v781 = vadd.f32 0.0, %v780
    %v782 = vpop.f32.mrb[0].mxu0
    %783 = vdwg.mxu0
    %v785 = vrot.slane %v781, 4
    %v786 = vrot.slane %v781, 5
    %v789 = vadd.f32 %v143, %v785
    %v790 = vadd.f32 %v148, %v786
    %v791 = vxor.u32 %v789, 2147483648
    %v792 = vxor.u32 %v790, 2147483648
    %v793 = vmul.f32 %v791, 1.442695
    %v794 = vpow.pop %v793
    %v795 = vmul.f32 %v792, 1.442695
    %v796 = vpow.pop %v795
    %v797 = vadd.f32 %v794, 1.0
    %v798 = vadd.f32 %v796, 1.0
    %v799 = vrcp.pop %v797
    %v800 = vmul.f32 1.0, %v799
    %v801 = vrcp.pop %v798
    %v802 = vmul.f32 1.0, %v801
    %v803 = vmul.f32 %v800, 2.0
    %v804 = vmul.f32 %v802, 2.0
    %v805 = vsub.f32 %v803, 1.0
    %v806 = vsub.f32 %v804, 1.0
    %v809 = vrot.slane %v691, 7
    %v810 = vrot.slane %v692, 7
    %v813 = vmul.f32 %v800, %v809
    %v814 = vmul.f32 %v802, %v810
    %817 = vrot.lane.b32.xlu0 %v805, 64
    %v818 = vpop.permute.xlu0 %817
    %819 = vrot.lane.b32.xlu0 %v806, 64
    %v820 = vpop.permute.xlu0 %819
    %v823 = vmul.f32 %v800, %v818
    %v824 = vmul.f32 %v802, %v820
    %827 = vrot.lane.b32.xlu0 %v823, 32
    %v828 = vpop.permute.xlu0 %827
    %829 = vrot.lane.b32.xlu0 %v824, 32
    %v830 = vpop.permute.xlu0 %829
    %v833 = vadd.f32 %v813, %v828
    %v834 = vadd.f32 %v814, %v830
    %v835 = vtanh.pop %v833
    %v836 = vtanh.pop %v834
    %839 = vrot.lane.b32.xlu0 %v835, 64
    %v840 = vpop.permute.xlu0 %839
    %841 = vrot.lane.b32.xlu0 %v836, 64
    %v842 = vpop.permute.xlu0 %841
    %v845 = vmul.f32 %v800, %v840
    %v846 = vmul.f32 %v802, %v842
    %v849 = vrot.slane %v845, 4
    %v850 = vrot.slane %v846, 3
    %v851 = vsel %vm284, %v850, %v849
    %852 = vrot.lane.b32.xlu0 %v851, 32
    %v853 = vpop.permute.xlu0 %852
    %v854 = vsel %vm151, %v853, 0
    %856 = vmatprep.subr.mxu0 0.0
    %857 = vmatpush1.msra.mxu0 %v52
    %858 = vmatprep.subr.mxu0 0.0
    %859 = vmatpush1.msra.mxu0 %v53
    %860 = vmatprep.subr.mxu0 0.0
    %861 = vmatpush1.msra.mxu0 %v54
    %862 = vmatprep.subr.mxu0 0.0
    %863 = vmatpush1.msra.mxu0 %v55
    %864 = vmatprep.subr.mxu0 0.0
    %865 = vmatpush1.msra.mxu0 0.0
    %866 = vmatprep.subr.mxu0 0.0
    %867 = vmatpush1.msra.mxu0 0.0
    %868 = vmatprep.subr.mxu0 0.0
    %869 = vmatpush1.msra.mxu0 0.0
    %870 = vmatprep.subr.mxu0 0.0
    %871 = vmatpush1.msra.mxu0 0.0
    %872 = vmatprep.subr.mxu0 0.0
    %873 = vmatpush1.msra.mxu0 0.0
    %874 = vmatprep.subr.mxu0 0.0
    %875 = vmatpush1.msra.mxu0 0.0
    %876 = vmatprep.subr.mxu0 0.0
    %877 = vmatpush1.msra.mxu0 0.0
    %878 = vmatprep.subr.mxu0 0.0
    %879 = vmatpush1.msra.mxu0 0.0
    %880 = vmatprep.subr.mxu0 0.0
    %881 = vmatpush1.msra.mxu0 0.0
    %882 = vmatprep.subr.mxu0 0.0
    %883 = vmatpush1.msra.mxu0 0.0
    %884 = vmatprep.subr.mxu0 0.0
    %885 = vmatpush1.msra.mxu0 0.0
    %886 = vmatprep.subr.mxu0 0.0
    %887 = vmatpush1.msra.mxu0 0.0
    %888 = vmatprep.subr.mxu0 0.0
    %889 = vmatpush1.msra.mxu0 0.0
    %890 = vmatprep.subr.mxu0 0.0
    %891 = vmatpush1.msra.mxu0 0.0
    %892 = vmatprep.subr.mxu0 0.0
    %893 = vmatpush1.msra.mxu0 0.0
    %894 = vmatprep.subr.mxu0 0.0
    %895 = vmatpush1.msra.mxu0 0.0
    %896 = vmatprep.subr.mxu0 0.0
    %897 = vmatpush1.msra.mxu0 0.0
    %898 = vmatprep.subr.mxu0 0.0
    %899 = vmatpush1.msra.mxu0 0.0
    %900 = vmatprep.subr.mxu0 0.0
    %901 = vmatpush1.msra.mxu0 0.0
    %902 = vmatprep.subr.mxu0 0.0
    %903 = vmatpush1.msra.mxu0 0.0
    %904 = vmatprep.subr.mxu0 0.0
    %905 = vmatpush1.msra.mxu0 0.0
    %906 = vmatprep.subr.mxu0 0.0
    %907 = vmatpush1.msra.mxu0 0.0
    %908 = vmatprep.subr.mxu0 0.0
    %909 = vmatpush1.msra.mxu0 0.0
    %910 = vmatprep.subr.mxu0 0.0
    %911 = vmatpush1.msra.mxu0 0.0
    %912 = vmatprep.subr.mxu0 0.0
    %913 = vmatpush1.msra.mxu0 0.0
    %914 = vmatprep.subr.mxu0 0.0
    %915 = vmatpush1.msra.mxu0 0.0
    %916 = vmatprep.subr.mxu0 0.0
    %917 = vmatpush1.msra.mxu0 0.0
    %918 = vmatprep.subr.mxu0 0.0
    %919 = vmatpush1.msra.mxu0 0.0
    %920 = vmatprep.mubr.f32.mxu0 0.0
    %921 = vmatmul.mubr.f32.gmra.mrb[0].mxu0 %v854
    %v922 = vpop.f32.mrb[0].mxu0
    %v923 = vadd.f32 0.0, %v922
    %v924 = vpop.f32.mrb[0].mxu0
    %925 = vdwg.mxu0
    %v927 = vrot.slane %v923, 3
    %v928 = vrot.slane %v923, 4
    %v931 = vadd.f32 %v143, %v927
    %v932 = vadd.f32 %v148, %v928
    %v933 = vxor.u32 %v931, 2147483648
    %v934 = vxor.u32 %v932, 2147483648
    %v935 = vmul.f32 %v933, 1.442695
    %v936 = vpow.pop %v935
    %v937 = vmul.f32 %v934, 1.442695
    %v938 = vpow.pop %v937
    %v939 = vadd.f32 %v936, 1.0
    %v940 = vadd.f32 %v938, 1.0
    %v941 = vrcp.pop %v939
    %v942 = vmul.f32 1.0, %v941
    %v943 = vrcp.pop %v940
    %v944 = vmul.f32 1.0, %v943
    %v945 = vmul.f32 %v942, 2.0
    %v946 = vmul.f32 %v944, 2.0
    %v947 = vsub.f32 %v945, 1.0
    %v948 = vsub.f32 %v946, 1.0
    %v951 = vrot.slane %v833, 7
    %v952 = vrot.slane %v834, 7
    %v955 = vmul.f32 %v942, %v951
    %v956 = vmul.f32 %v944, %v952
    %959 = vrot.lane.b32.xlu0 %v947, 64
    %v960 = vpop.permute.xlu0 %959
    %961 = vrot.lane.b32.xlu0 %v948, 64
    %v962 = vpop.permute.xlu0 %961
    %v965 = vmul.f32 %v942, %v960
    %v966 = vmul.f32 %v944, %v962
    %969 = vrot.lane.b32.xlu0 %v965, 32
    %v970 = vpop.permute.xlu0 %969
    %971 = vrot.lane.b32.xlu0 %v966, 32
    %v972 = vpop.permute.xlu0 %971
    %v975 = vadd.f32 %v955, %v970
    %v976 = vadd.f32 %v956, %v972
    %v977 = vtanh.pop %v975
    %v978 = vtanh.pop %v976
    %981 = vrot.lane.b32.xlu0 %v977, 64
    %v982 = vpop.permute.xlu0 %981
    %983 = vrot.lane.b32.xlu0 %v978, 64
    %v984 = vpop.permute.xlu0 %983
    %v987 = vmul.f32 %v942, %v982
    %v988 = vmul.f32 %v944, %v984
    %v991 = vrot.slane %v987, 5
    %v992 = vrot.slane %v988, 4
    %v993 = vsel %vm284, %v992, %v991
    %994 = vrot.lane.b32.xlu0 %v993, 32
    %v995 = vpop.permute.xlu0 %994
    %v996 = vsel %vm151, %v995, 0
    %998 = vmatprep.subr.mxu0 0.0
    %999 = vmatpush1.msra.mxu0 %v52
    %1000 = vmatprep.subr.mxu0 0.0
    %1001 = vmatpush1.msra.mxu0 %v53
    %1002 = vmatprep.subr.mxu0 0.0
    %1003 = vmatpush1.msra.mxu0 %v54
    %1004 = vmatprep.subr.mxu0 0.0
    %1005 = vmatpush1.msra.mxu0 %v55
    %1006 = vmatprep.subr.mxu0 0.0
    %1007 = vmatpush1.msra.mxu0 0.0
    %1008 = vmatprep.subr.mxu0 0.0
    %1009 = vmatpush1.msra.mxu0 0.0
    %1010 = vmatprep.subr.mxu0 0.0
    %1011 = vmatpush1.msra.mxu0 0.0
    %1012 = vmatprep.subr.mxu0 0.0
    %1013 = vmatpush1.msra.mxu0 0.0
    %1014 = vmatprep.subr.mxu0 0.0
    %1015 = vmatpush1.msra.mxu0 0.0
    %1016 = vmatprep.subr.mxu0 0.0
    %1017 = vmatpush1.msra.mxu0 0.0
    %1018 = vmatprep.subr.mxu0 0.0
    %1019 = vmatpush1.msra.mxu0 0.0
    %1020 = vmatprep.subr.mxu0 0.0
    %1021 = vmatpush1.msra.mxu0 0.0
    %1022 = vmatprep.subr.mxu0 0.0
    %1023 = vmatpush1.msra.mxu0 0.0
    %1024 = vmatprep.subr.mxu0 0.0
    %1025 = vmatpush1.msra.mxu0 0.0
    %1026 = vmatprep.subr.mxu0 0.0
    %1027 = vmatpush1.msra.mxu0 0.0
    %1028 = vmatprep.subr.mxu0 0.0
    %1029 = vmatpush1.msra.mxu0 0.0
    %1030 = vmatprep.subr.mxu0 0.0
    %1031 = vmatpush1.msra.mxu0 0.0
    %1032 = vmatprep.subr.mxu0 0.0
    %1033 = vmatpush1.msra.mxu0 0.0
    %1034 = vmatprep.subr.mxu0 0.0
    %1035 = vmatpush1.msra.mxu0 0.0
    %1036 = vmatprep.subr.mxu0 0.0
    %1037 = vmatpush1.msra.mxu0 0.0
    %1038 = vmatprep.subr.mxu0 0.0
    %1039 = vmatpush1.msra.mxu0 0.0
    %1040 = vmatprep.subr.mxu0 0.0
    %1041 = vmatpush1.msra.mxu0 0.0
    %1042 = vmatprep.subr.mxu0 0.0
    %1043 = vmatpush1.msra.mxu0 0.0
    %1044 = vmatprep.subr.mxu0 0.0
    %1045 = vmatpush1.msra.mxu0 0.0
    %1046 = vmatprep.subr.mxu0 0.0
    %1047 = vmatpush1.msra.mxu0 0.0
    %1048 = vmatprep.subr.mxu0 0.0
    %1049 = vmatpush1.msra.mxu0 0.0
    %1050 = vmatprep.subr.mxu0 0.0
    %1051 = vmatpush1.msra.mxu0 0.0
    %1052 = vmatprep.subr.mxu0 0.0
    %1053 = vmatpush1.msra.mxu0 0.0
    %1054 = vmatprep.subr.mxu0 0.0
    %1055 = vmatpush1.msra.mxu0 0.0
    %1056 = vmatprep.subr.mxu0 0.0
    %1057 = vmatpush1.msra.mxu0 0.0
    %1058 = vmatprep.subr.mxu0 0.0
    %1059 = vmatpush1.msra.mxu0 0.0
    %1060 = vmatprep.subr.mxu0 0.0
    %1061 = vmatpush1.msra.mxu0 0.0
    %1062 = vmatprep.mubr.f32.mxu0 0.0
    %1063 = vmatmul.mubr.f32.gmra.mrb[0].mxu0 %v996
    %v1064 = vpop.f32.mrb[0].mxu0
    %v1065 = vadd.f32 0.0, %v1064
    %v1066 = vpop.f32.mrb[0].mxu0
    %1067 = vdwg.mxu0
    %v1069 = vrot.slane %v1065, 2
    %v1070 = vrot.slane %v1065, 3
    %v1073 = vadd.f32 %v143, %v1069
    %v1074 = vadd.f32 %v148, %v1070
    %v1075 = vxor.u32 %v1073, 2147483648
    %v1076 = vxor.u32 %v1074, 2147483648
    %v1077 = vmul.f32 %v1075, 1.442695
    %v1078 = vpow.pop %v1077
    %v1079 = vmul.f32 %v1076, 1.442695
    %v1080 = vpow.pop %v1079
    %v1081 = vadd.f32 %v1078, 1.0
    %v1082 = vadd.f32 %v1080, 1.0
    %v1083 = vrcp.pop %v1081
    %v1084 = vmul.f32 1.0, %v1083
    %v1085 = vrcp.pop %v1082
    %v1086 = vmul.f32 1.0, %v1085
    %v1087 = vmul.f32 %v1084, 2.0
    %v1088 = vmul.f32 %v1086, 2.0
    %v1089 = vsub.f32 %v1087, 1.0
    %v1090 = vsub.f32 %v1088, 1.0
    %v1093 = vrot.slane %v975, 7
    %v1094 = vrot.slane %v976, 7
    %v1097 = vmul.f32 %v1084, %v1093
    %v1098 = vmul.f32 %v1086, %v1094
    %1101 = vrot.lane.b32.xlu0 %v1089, 64
    %v1102 = vpop.permute.xlu0 %1101
    %1103 = vrot.lane.b32.xlu0 %v1090, 64
    %v1104 = vpop.permute.xlu0 %1103
    %v1107 = vmul.f32 %v1084, %v1102
    %v1108 = vmul.f32 %v1086, %v1104
    %1111 = vrot.lane.b32.xlu0 %v1107, 32
    %v1112 = vpop.permute.xlu0 %1111
    %1113 = vrot.lane.b32.xlu0 %v1108, 32
    %v1114 = vpop.permute.xlu0 %1113
    %v1117 = vadd.f32 %v1097, %v1112
    %v1118 = vadd.f32 %v1098, %v1114
    %v1119 = vtanh.pop %v1117
    %v1120 = vtanh.pop %v1118
    %1123 = vrot.lane.b32.xlu0 %v1119, 64
    %v1124 = vpop.permute.xlu0 %1123
    %1125 = vrot.lane.b32.xlu0 %v1120, 64
    %v1126 = vpop.permute.xlu0 %1125
    %v1129 = vmul.f32 %v1084, %v1124
    %v1130 = vmul.f32 %v1086, %v1126
    %v1133 = vrot.slane %v1129, 6
    %v1134 = vrot.slane %v1130, 5
    %v1135 = vsel %vm284, %v1134, %v1133
    %1136 = vrot.lane.b32.xlu0 %v1135, 32
    %v1137 = vpop.permute.xlu0 %1136
    %v1138 = vsel %vm151, %v1137, 0
    %1140 = vmatprep.subr.mxu0 0.0
    %1141 = vmatpush1.msra.mxu0 %v52
    %1142 = vmatprep.subr.mxu0 0.0
    %1143 = vmatpush1.msra.mxu0 %v53
    %1144 = vmatprep.subr.mxu0 0.0
    %1145 = vmatpush1.msra.mxu0 %v54
    %1146 = vmatprep.subr.mxu0 0.0
    %1147 = vmatpush1.msra.mxu0 %v55
    %1148 = vmatprep.subr.mxu0 0.0
    %1149 = vmatpush1.msra.mxu0 0.0
    %1150 = vmatprep.subr.mxu0 0.0
    %1151 = vmatpush1.msra.mxu0 0.0
    %1152 = vmatprep.subr.mxu0 0.0
    %1153 = vmatpush1.msra.mxu0 0.0
    %1154 = vmatprep.subr.mxu0 0.0
    %1155 = vmatpush1.msra.mxu0 0.0
    %1156 = vmatprep.subr.mxu0 0.0
    %1157 = vmatpush1.msra.mxu0 0.0
    %1158 = vmatprep.subr.mxu0 0.0
    %1159 = vmatpush1.msra.mxu0 0.0
    %1160 = vmatprep.subr.mxu0 0.0
    %1161 = vmatpush1.msra.mxu0 0.0
    %1162 = vmatprep.subr.mxu0 0.0
    %1163 = vmatpush1.msra.mxu0 0.0
    %1164 = vmatprep.subr.mxu0 0.0
    %1165 = vmatpush1.msra.mxu0 0.0
    %1166 = vmatprep.subr.mxu0 0.0
    %1167 = vmatpush1.msra.mxu0 0.0
    %1168 = vmatprep.subr.mxu0 0.0
    %1169 = vmatpush1.msra.mxu0 0.0
    %1170 = vmatprep.subr.mxu0 0.0
    %1171 = vmatpush1.msra.mxu0 0.0
    %1172 = vmatprep.subr.mxu0 0.0
    %1173 = vmatpush1.msra.mxu0 0.0
    %1174 = vmatprep.subr.mxu0 0.0
    %1175 = vmatpush1.msra.mxu0 0.0
    %1176 = vmatprep.subr.mxu0 0.0
    %1177 = vmatpush1.msra.mxu0 0.0
    %1178 = vmatprep.subr.mxu0 0.0
    %1179 = vmatpush1.msra.mxu0 0.0
    %1180 = vmatprep.subr.mxu0 0.0
    %1181 = vmatpush1.msra.mxu0 0.0
    %1182 = vmatprep.subr.mxu0 0.0
    %1183 = vmatpush1.msra.mxu0 0.0
    %1184 = vmatprep.subr.mxu0 0.0
    %1185 = vmatpush1.msra.mxu0 0.0
    %1186 = vmatprep.subr.mxu0 0.0
    %1187 = vmatpush1.msra.mxu0 0.0
    %1188 = vmatprep.subr.mxu0 0.0
    %1189 = vmatpush1.msra.mxu0 0.0
    %1190 = vmatprep.subr.mxu0 0.0
    %1191 = vmatpush1.msra.mxu0 0.0
    %1192 = vmatprep.subr.mxu0 0.0
    %1193 = vmatpush1.msra.mxu0 0.0
    %1194 = vmatprep.subr.mxu0 0.0
    %1195 = vmatpush1.msra.mxu0 0.0
    %1196 = vmatprep.subr.mxu0 0.0
    %1197 = vmatpush1.msra.mxu0 0.0
    %1198 = vmatprep.subr.mxu0 0.0
    %1199 = vmatpush1.msra.mxu0 0.0
    %1200 = vmatprep.subr.mxu0 0.0
    %1201 = vmatpush1.msra.mxu0 0.0
    %1202 = vmatprep.subr.mxu0 0.0
    %1203 = vmatpush1.msra.mxu0 0.0
    %1204 = vmatprep.mubr.f32.mxu0 0.0
    %1205 = vmatmul.mubr.f32.gmra.mrb[0].mxu0 %v1138
    %v1206 = vpop.f32.mrb[0].mxu0
    %v1207 = vadd.f32 0.0, %v1206
    %v1208 = vpop.f32.mrb[0].mxu0
    %1209 = vdwg.mxu0
    %v1211 = vrot.slane %v1207, 1
    %v1212 = vrot.slane %v1207, 2
    %v1215 = vadd.f32 %v143, %v1211
    %v1216 = vadd.f32 %v148, %v1212
    %v1217 = vxor.u32 %v1215, 2147483648
    %v1218 = vxor.u32 %v1216, 2147483648
    %v1219 = vmul.f32 %v1217, 1.442695
    %v1220 = vpow.pop %v1219
    %v1221 = vmul.f32 %v1218, 1.442695
    %v1222 = vpow.pop %v1221
    %v1223 = vadd.f32 %v1220, 1.0
    %v1224 = vadd.f32 %v1222, 1.0
    %v1225 = vrcp.pop %v1223
    %v1226 = vmul.f32 1.0, %v1225
    %v1227 = vrcp.pop %v1224
    %v1228 = vmul.f32 1.0, %v1227
    %v1229 = vmul.f32 %v1226, 2.0
    %v1230 = vmul.f32 %v1228, 2.0
    %v1231 = vsub.f32 %v1229, 1.0
    %v1232 = vsub.f32 %v1230, 1.0
    %v1235 = vrot.slane %v1117, 7
    %v1236 = vrot.slane %v1118, 7
    %v1239 = vmul.f32 %v1226, %v1235
    %v1240 = vmul.f32 %v1228, %v1236
    %1243 = vrot.lane.b32.xlu0 %v1231, 64
    %v1244 = vpop.permute.xlu0 %1243
    %1245 = vrot.lane.b32.xlu0 %v1232, 64
    %v1246 = vpop.permute.xlu0 %1245
    %v1249 = vmul.f32 %v1226, %v1244
    %v1250 = vmul.f32 %v1228, %v1246
    %1253 = vrot.lane.b32.xlu0 %v1249, 32
    %v1254 = vpop.permute.xlu0 %1253
    %1255 = vrot.lane.b32.xlu0 %v1250, 32
    %v1256 = vpop.permute.xlu0 %1255
    %v1259 = vadd.f32 %v1239, %v1254
    %v1260 = vadd.f32 %v1240, %v1256
    %v1261 = vtanh.pop %v1259
    %v1262 = vtanh.pop %v1260
    %1265 = vrot.lane.b32.xlu0 %v1261, 64
    %v1266 = vpop.permute.xlu0 %1265
    %1267 = vrot.lane.b32.xlu0 %v1262, 64
    %v1268 = vpop.permute.xlu0 %1267
    %v1271 = vmul.f32 %v1226, %v1266
    %v1272 = vmul.f32 %v1228, %v1268
    %vm1273 = vcmask 1040384
    %v1274 = vsel %vm1273, %v279, %v420
    %v1275 = vsel %vm1273, %v280, %v421
    %vm1276 = vcmask 1041408
    %v1277 = vsel %vm1276, %v1274, %v561
    %v1278 = vsel %vm1276, %v1275, %v562
    %vm1279 = vcmask 1042432
    %v1280 = vsel %vm1279, %v1277, %v703
    %v1281 = vsel %vm1279, %v1278, %v704
    %vm1282 = vcmask 1043456
    %v1283 = vsel %vm1282, %v1280, %v845
    %v1284 = vsel %vm1282, %v1281, %v846
    %vm1285 = vcmask 1044480
    %v1286 = vsel %vm1285, %v1283, %v987
    %v1287 = vsel %vm1285, %v1284, %v988
    %vm1288 = vcmask 1045504
    %v1289 = vsel %vm1288, %v1286, %v1129
    %v1290 = vsel %vm1288, %v1287, %v1130
    %vm1291 = vcmask 1046528
    %v1292 = vsel %vm1291, %v1289, %v1271
    %v1293 = vsel %vm1291, %v1290, %v1272
    %v1296 = vrot.slane %v1271, 7
    %v1297 = vrot.slane %v1272, 7
    %v1300 = vrot.slane %v1129, 5
    %v1303 = vrot.slane %v987, 3
    %v1304 = vrot.slane %v988, 3
    %v1307 = vrot.slane %v845, 1
    %v1308 = vrot.slane %v846, 1
    %v1311 = vrot.slane %v703, 7
    %v1312 = vrot.slane %v704, 7
    %v1315 = vrot.slane %v561, 5
    %v1316 = vrot.slane %v562, 5
    %v1319 = vrot.slane %v420, 3
    %v1320 = vrot.slane %v421, 3
    %v1323 = vrot.slane %v279, 1
    %v1324 = vrot.slane %v280, 1
    %v1327 = vsel %vm1273, %v1296, %v1300
    %v1328 = vsel %vm1273, %v1297, %v1134
    %v1329 = vsel %vm1276, %v1327, %v1303
    %v1330 = vsel %vm1276, %v1328, %v1304
    %v1331 = vsel %vm1279, %v1329, %v1307
    %v1332 = vsel %vm1279, %v1330, %v1308
    %v1333 = vsel %vm1282, %v1331, %v1311
    %v1334 = vsel %vm1282, %v1332, %v1312
    %v1335 = vsel %vm1285, %v1333, %v1315
    %v1336 = vsel %vm1285, %v1334, %v1316
    %v1337 = vsel %vm1288, %v1335, %v1319
    %v1338 = vsel %vm1288, %v1336, %v1320
    %v1339 = vsel %vm1291, %v1337, %v1323
    %v1340 = vsel %vm1291, %v1338, %v1324
    %v1341 = vlaneseq
    %v1342 = vand.u32 %v1341, 127
    %vm1343 = vcmp.lt.s32.totalorder %v1342, 16
    %v1344 = vsel %vm1343, 1, 0
    %vm1345 = vcmp.eq.s32.totalorder %v1344, 1
    %1348 = vrot.lane.b32.xlu0 %v1292, 32
    %v1349 = vpop.permute.xlu0 %1348
    %1350 = vrot.lane.b32.xlu0 %v1293, 32
    %v1351 = vpop.permute.xlu0 %1350
    %1356 = vrot.lane.b32.xlu0 %v1339, 32
    %v1357 = vpop.permute.xlu0 %1356
    %1358 = vrot.lane.b32.xlu0 %v1340, 32
    %v1359 = vpop.permute.xlu0 %1358
    %v1362 = vsel %vm1345, %v1349, %v1357
    %v1363 = vsel %vm1345, %v1351, %v1359
    %v1364 = vtanh.pop %v1362
    %v1365 = vtanh.pop %v1363
    %v1368 = vunpack.c.l.s4 1966171168
    %v1369 = vunpack.c.0.s8 %v1368
    %v1370 = vlaneseq
    %v1371 = vshrl.u32 %v1370, 7
    %v1372 = vsub.s32 %v1369, %v1371
    %v1373 = vrot.slane %v57, %v1372
    %v1374 = vcombine.high %v1373, %v1373
    %v1376 = vunpack.c.l.s4 1966171168
    %v1377 = vunpack.c.0.s8 %v1376
    %v1378 = vlaneseq
    %v1379 = vshrl.u32 %v1378, 7
    %v1380 = vsub.s32 %v1377, %v1379
    %v1381 = vrot.slane %v1373, %v1380
    %v1383 = vunpack.c.l.s4 1966171168
    %v1384 = vunpack.c.0.s8 %v1383
    %v1385 = vlaneseq
    %v1386 = vshrl.u32 %v1385, 7
    %v1387 = vsub.s32 %v1384, %v1386
    %v1388 = vrot.slane %v1374, %v1387
    %v1389 = vlaneseq
    %v1390 = vshrl.u32 %v1389, 7
    %v1391 = vsub.s32 0, %v1390
    %v1392 = vrot.slane %v1381, %v1391
    %v1393 = vlaneseq
    %v1394 = vshrl.u32 %v1393, 7
    %v1395 = vsub.s32 0, %v1394
    %v1396 = vrot.slane %v1388, %v1395
    %v1399 = vmul.f32 %v1364, %v1392
    %v1400 = vmul.f32 %v1365, %v1396
    %v1401 = vsel %vm151, %v1399, 0.0
    %1402 = vadd.xlane.f32.xlu0 %v1401
    %v1403 = vpop.xlane.xlu0 %1402
    %v1404 = vsel %vm151, %v1400, 0.0
    %1405 = vadd.xlane.f32.xlu0 %v1404
    %v1406 = vpop.xlane.xlu0 %1405
    %v1409 = vlaneseq
    %v1410 = vshrl.u32 %v1409, 7
    %v1411 = vsub.s32 %v1342, %v1410
    %v1412 = vrot.slane %v1403, %v1411
    %v1413 = vlaneseq
    %v1414 = vshrl.u32 %v1413, 7
    %v1415 = vsub.s32 %v1342, %v1414
    %v1416 = vrot.slane %v1406, %v1415
    %v1417 = vsel %vm284, %v1416, %v1412
    %vm1419 = vcmask 58368
    %v1420 = vsel %vm1419, %v1417, -inf
    %1421 = vmax.xlane.f32.xlu0 %v1420
    %v1422 = vpop.xlane.xlu0 %1421
    %v1424 = vlaneseq
    %v1425 = vshrl.u32 %v1424, 7
    %v1426 = vsub.s32 0, %v1425
    %v1427 = vrot.slane %v1422, %v1426
    %v1428 = vlaneseq
    %v1429 = vshrl.u32 %v1428, 7
    %v1430 = vsub.s32 1, %v1429
    %v1431 = vrot.slane %v1422, %v1430
    %v1434 = vsub.f32 %v1403, %v1427
    %v1435 = vsub.f32 %v1406, %v1431
    %v1436 = vmul.f32 %v1434, 1.442695
    %v1437 = vpow.pop %v1436
    %v1438 = vmul.f32 %v1435, 1.442695
    %v1439 = vpow.pop %v1438
    %1441 = vset.pattern.permute.xlu0 0
    %1442 = vperm.xlu0 %1441, %v1437
    %v1443 = vpop.permute.xlu0 %1442
    %1446 = vset.pattern.permute.xlu0 0
    %1447 = vperm.xlu0 %1446, %v1439
    %v1448 = vpop.permute.xlu0 %1447
    %v1450 = vmul.f32 %v1443, %v1362
    %v1451 = vmul.f32 %v1448, %v1363
    %v1452 = vsel %vm151, %v1450, 0.0
    %v1453 = vrot.slane %v1452, 4
    %v1454 = vadd.f32 %v1452, %v1453
    %v1455 = vrot.slane %v1454, 2
    %v1456 = vadd.f32 %v1454, %v1455
    %v1457 = vrot.slane %v1456, 1
    %v1458 = vadd.f32 %v1456, %v1457
    %v1459 = vsel %vm151, %v1451, 0.0
    %v1460 = vrot.slane %v1459, 4
    %v1461 = vadd.f32 %v1459, %v1460
    %v1462 = vrot.slane %v1461, 2
    %v1463 = vadd.f32 %v1461, %v1462
    %v1464 = vrot.slane %v1463, 1
    %v1465 = vadd.f32 %v1463, %v1464
    %v1466 = vlaneseq
    %v1467 = vshrl.u32 %v1466, 7
    %v1468 = vsub.s32 %v1342, %v1467
    %v1469 = vrot.slane %v1443, %v1468
    %v1470 = vlaneseq
    %v1471 = vshrl.u32 %v1470, 7
    %v1472 = vsub.s32 %v1342, %v1471
    %v1473 = vrot.slane %v1448, %v1472
    %v1474 = vsel %vm284, %v1473, %v1469
    %v1476 = vsel %vm1419, %v1474, 0.0
    %1477 = vadd.xlane.f32.xlu0 %v1476
    %v1478 = vpop.xlane.xlu0 %1477
    %v1479 = vrcp.pop %v1478
    %v1481 = vrot.slane %v1479, 1
    %v1484 = vmul.f32 %v1458, %v1479
    %v1485 = vmul.f32 %v1465, %v1481
    %v1486 = vtanh.pop %v1484
    %v1487 = vtanh.pop %v1485
    %v1490 = vrot.slane %v1487, 7
    %v1491 = vsel %vm284, %v1490, %v1486
    %v1492 = vsel %vm151, %v1491, 0
    %1494 = vmatprep.subr.mxu0 0.0
    %1495 = vmatpush1.msra.mxu0 %v59
    %1496 = vmatprep.subr.mxu0 0.0
    %1497 = vmatpush1.msra.mxu0 %v60
    %1498 = vmatprep.subr.mxu0 0.0
    %1499 = vmatpush1.msra.mxu0 %v61
    %1500 = vmatprep.subr.mxu0 0.0
    %1501 = vmatpush1.msra.mxu0 %v62
    %1502 = vmatprep.subr.mxu0 0.0
    %1503 = vmatpush1.msra.mxu0 0.0
    %1504 = vmatprep.subr.mxu0 0.0
    %1505 = vmatpush1.msra.mxu0 0.0
    %1506 = vmatprep.subr.mxu0 0.0
    %1507 = vmatpush1.msra.mxu0 0.0
    %1508 = vmatprep.subr.mxu0 0.0
    %1509 = vmatpush1.msra.mxu0 0.0
    %1510 = vmatprep.subr.mxu0 0.0
    %1511 = vmatpush1.msra.mxu0 0.0
    %1512 = vmatprep.subr.mxu0 0.0
    %1513 = vmatpush1.msra.mxu0 0.0
    %1514 = vmatprep.subr.mxu0 0.0
    %1515 = vmatpush1.msra.mxu0 0.0
    %1516 = vmatprep.subr.mxu0 0.0
    %1517 = vmatpush1.msra.mxu0 0.0
    %1518 = vmatprep.subr.mxu0 0.0
    %1519 = vmatpush1.msra.mxu0 0.0
    %1520 = vmatprep.subr.mxu0 0.0
    %1521 = vmatpush1.msra.mxu0 0.0
    %1522 = vmatprep.subr.mxu0 0.0
    %1523 = vmatpush1.msra.mxu0 0.0
    %1524 = vmatprep.subr.mxu0 0.0
    %1525 = vmatpush1.msra.mxu0 0.0
    %1526 = vmatprep.subr.mxu0 0.0
    %1527 = vmatpush1.msra.mxu0 0.0
    %1528 = vmatprep.subr.mxu0 0.0
    %1529 = vmatpush1.msra.mxu0 0.0
    %1530 = vmatprep.subr.mxu0 0.0
    %1531 = vmatpush1.msra.mxu0 0.0
    %1532 = vmatprep.subr.mxu0 0.0
    %1533 = vmatpush1.msra.mxu0 0.0
    %1534 = vmatprep.subr.mxu0 0.0
    %1535 = vmatpush1.msra.mxu0 0.0
    %1536 = vmatprep.subr.mxu0 0.0
    %1537 = vmatpush1.msra.mxu0 0.0
    %1538 = vmatprep.subr.mxu0 0.0
    %1539 = vmatpush1.msra.mxu0 0.0
    %1540 = vmatprep.subr.mxu0 0.0
    %1541 = vmatpush1.msra.mxu0 0.0
    %1542 = vmatprep.subr.mxu0 0.0
    %1543 = vmatpush1.msra.mxu0 0.0
    %1544 = vmatprep.subr.mxu0 0.0
    %1545 = vmatpush1.msra.mxu0 0.0
    %1546 = vmatprep.subr.mxu0 0.0
    %1547 = vmatpush1.msra.mxu0 0.0
    %1548 = vmatprep.subr.mxu0 0.0
    %1549 = vmatpush1.msra.mxu0 0.0
    %1550 = vmatprep.subr.mxu0 0.0
    %1551 = vmatpush1.msra.mxu0 0.0
    %1552 = vmatprep.subr.mxu0 0.0
    %1553 = vmatpush1.msra.mxu0 0.0
    %1554 = vmatprep.subr.mxu0 0.0
    %1555 = vmatpush1.msra.mxu0 0.0
    %1556 = vmatprep.subr.mxu0 0.0
    %1557 = vmatpush1.msra.mxu0 0.0
    %1558 = vmatprep.mubr.f32.mxu0 0.0
    %1559 = vmatmul.mubr.f32.gmra.mrb[0].mxu0 %v1492
    %v1560 = vpop.f32.mrb[0].mxu0
    %v1561 = vadd.f32 %v58, %v1560
    %v1562 = vpop.f32.mrb[0].mxu0
    %1563 = vdwg.mxu0
    %vm1564 = vcmask 91136
    %v1565 = vsel %vm1564, %v1561, -inf
    %1566 = vmax.xlane.f32.xlu0 %v1565
    %v1567 = vpop.xlane.xlu0 %1566
    %v1568 = vsub.f32 %v1561, %v1567
    %v1569 = vmul.f32 %v1568, 1.442695
    %v1570 = vpow.pop %v1569
    %v1571 = vsel %vm1564, %v1570, 0.0
    %1572 = vadd.xlane.f32.xlu0 %v1571
    %v1573 = vpop.xlane.xlu0 %1572
    %v1574 = vrcp.pop %v1573
    %v1575 = vmul.f32 %v1570, %v1574
    %1576 = vst.msk [vmem:[#allocation7] sm:$0x3] %vm1564, %v1575
    // Predicated region
    $region18: #{tpu_custom_call.1} parent=1 // pred_check
      _
    $region19: #{tpu_custom_call.1} parent=1 // pred_check_branch
      %1578 = sbr.rel (0) target = $region21
    $region20: #{tpu_custom_call.1} parent=1 // pred_region
      %s1580 = ssub.s32 32, 32
      %1581 = vsyncadd [#allocation4], %s1580
      %s1583 = sshll.u32 [#allocation7], 4
      %s1584 = int_to_ptr.vmem [resolvable:$true] %s1583
      %1586 = dma.vmem_to_hbm [thread:$0]  %s1584, 32, %s2, [#allocation4]
    $region21: #{tpu_custom_call.1} parent=1 // pred_fallthru
      _
    // Predicated region
    $region22: #{tpu_custom_call.1} parent=1 // pred_check
      _
    $region23: #{tpu_custom_call.1} parent=1 // pred_check_branch
      %1588 = sbr.rel (0) target = $region25
    $region24: #{tpu_custom_call.1} parent=1 // pred_region
      %1589 = dma.done [#allocation4], 32
    $region25: #{tpu_custom_call.1} parent=1 // pred_fallthru
      _
    %1590 = vsyncpa [#allocation3], 1
    %1591 = vsyncpa [#allocation6], 1
    %1592 = vsyncpa [#allocation4], 1

</llo_original>
